<compile_context>
chip_gen: v7x
topology: tpu7x:2x2x1
jax: 0.10.0
libtpu: 0.0.40
codegen_flags: <defaults>
</compile_context>

<pallas_src>
import jax
import jax.numpy as jnp
from jax.experimental import pallas as pl
from jax.experimental.pallas import tpu as pltpu

# ---- module-equivalent constants (small, deterministic) --------------------
LEN_O = 32            # base tokenizer vocab size (before adding condenser tokens)
NUM_C_TOKENS = 3      # len({'c_BOS', 'c_EOS', 'c_med'}) -> rows of self.embed
V = LEN_O + NUM_C_TOKENS   # resized vocab
D = 128               # embedding dim (module default 4096; small + lane aligned)
TB = 512              # output rows per grid step (one big tile store per step)
ROW_CHUNK = 128       # rows per in-kernel one-hot matmul chunk
LANE = 128


def gather_kernel(tok_ref, hi_ref, lo_ref, out_ref):
    """One grid step gathers TB token rows via strip-mined one-hot bf16 matmuls.

    tok_ref : VMEM i32 [n_pad, 1]    ALL token ids (constant index_map, resident)
    hi_ref  : VMEM bf16 [V_pad, D]   bf16 high plane of merged table
    lo_ref  : VMEM bf16 [V_pad, D]   bf16 low (residual) plane of merged table
    out_ref : VMEM f32 [TB, D]       output tile for this grid step
    """
    tb, _ = out_ref.shape
    v_pad = hi_ref.shape[0]
    rc = min(ROW_CHUNK, tb)
    n_chunks = tb // rc

    # Hoisted: vocab-axis iota shared by every chunk (not re-built per iter).
    vocab = jax.lax.broadcasted_iota(jnp.int32, (rc, v_pad), 1)   # (rc, V_pad)
    hi = hi_ref[...]
    lo = lo_ref[...]

    base = pl.program_id(0) * tb
    for c in range(n_chunks):
        start = pl.multiple_of(base + c * rc, rc)
        tok = tok_ref[pl.ds(start, rc), :]                        # (rc, 1) i32
        one_hot = (vocab == tok).astype(jnp.bfloat16)             # exact 0/1
        # two single-pass bf16 matmuls with f32 accumulation reconstruct the
        # f32 table row to ~2^-16 relative error (one-hot selectors are exact)
        g = jnp.dot(one_hot, hi, preferred_element_type=jnp.float32)
        g = g + jnp.dot(one_hot, lo, preferred_element_type=jnp.float32)
        out_ref[c * rc:(c + 1) * rc, :] = g.astype(out_ref.dtype)


def extract_embeddings(tokens, table, internal_embed, *, tb=TB):
    """Pallas equivalent of CondenserTokenizer.extract_embeddings."""
    B, S = tokens.shape
    vsz, dim = table.shape

    # `.half()` semantics: round condenser rows through f16, then merge them
    # into the table once (gather from merged table == conditional replace,
    # since every valid token id < vsz).  NOTE: assumes condenser token ids
    # are the contiguous range [LEN_O, LEN_O + NUM_C_TOKENS), as in the module.
    embed_h = internal_embed.astype(jnp.float16).astype(table.dtype)
    merged = table.at[LEN_O:LEN_O + NUM_C_TOKENS].set(embed_h)

    # pad vocab rows to a lane multiple for the one-hot MXU matmul
    v_pad = LANE * pl.cdiv(vsz, LANE)
    table_pad = jnp.zeros((v_pad, dim), merged.dtype).at[:vsz, :].set(merged)

    # split the f32 table into two bf16 planes (hi + lo ~= table to ~2^-16)
    hi = table_pad.astype(jnp.bfloat16)
    lo = (table_pad - hi.astype(jnp.float32)).astype(jnp.bfloat16)

    # flatten, clamp (no OOB check on VMEM refs), pad to a TB multiple
    n = B * S
    n_blocks = pl.cdiv(n, tb)
    n_pad = n_blocks * tb
    rc = min(ROW_CHUNK, tb)
    assert tb % rc == 0, "TB must be a multiple of ROW_CHUNK"
    tok = jnp.clip(tokens.reshape(-1).astype(jnp.int32), 0, vsz - 1)
    tok = jnp.zeros((n_pad, 1), jnp.int32).at[:n, 0].set(tok)

    flops = 2 * 2 * n_pad * v_pad * dim          # two bf16 one-hot matmuls
    bytes_accessed = (n_pad * dim * 4            # f32 output writeback
                      + 2 * v_pad * dim * 2      # bf16 hi/lo planes (read once)
                      + n_pad * 4)               # token ids (read once)

    out = pl.pallas_call(
        gather_kernel,
        out_shape=jax.ShapeDtypeStruct((n_pad, dim), table.dtype),
        grid=(n_blocks,),
        in_specs=[
            # whole token-id array, constant index map -> resident, no per-step DMA
            pl.BlockSpec((n_pad, 1), lambda i: (0, 0)),
            # table planes, constant index map -> resident, no re-DMA per step
            pl.BlockSpec((v_pad, dim), lambda i: (0, 0)),
            pl.BlockSpec((v_pad, dim), lambda i: (0, 0)),
        ],
        out_specs=pl.BlockSpec((tb, dim), lambda i: (i, 0)),
        compiler_params=pltpu.CompilerParams(
            dimension_semantics=("parallel",),
            vmem_limit_bytes=32 * 1024 * 1024),
        cost_estimate=pl.CostEstimate(flops=flops, transcendentals=0,
                                      bytes_accessed=bytes_accessed),
    )(tok, hi, lo)
    return out[:n].reshape(B, S, dim)


if __name__ == "__main__":
    key = jax.random.PRNGKey(0)
    k_tok, k_table, k_embed = jax.random.split(key, 3)

    # N = B*S = 2048 -> 4 parallel grid steps of TB=512 rows each
    # (even and >=4 so both v7x TensorCores get >=2 pipelined steps)
    B, S = 2, 1024
    tokens = jax.random.randint(k_tok, (B, S), 0, V, dtype=jnp.int32)
    # guarantee some condenser tokens appear
    tokens = tokens.at[0, 0].set(LEN_O)          # <C_BOS>
    tokens = tokens.at[0, 1].set(LEN_O + 2)      # <C_MED>
    tokens = tokens.at[1, S - 1].set(LEN_O + 1)  # <C_EOS>

    # deterministic "parameters": resized external embedding table and the
    # module's internal self.embed (normal init, as in reset_param()).
    table = jax.random.normal(k_table, (V, D), dtype=jnp.float32)
    internal_embed = jax.random.normal(k_embed, (NUM_C_TOKENS, D),
                                       dtype=jnp.float32)

    out = jax.block_until_ready(extract_embeddings(tokens, table, internal_embed))

    # pure-JAX reference for the same semantics
    embed_h = internal_embed.astype(jnp.float16).astype(jnp.float32)
    ref = table[tokens]
    special = tokens >= LEN_O
    rep = embed_h[jnp.clip(tokens - LEN_O, 0, NUM_C_TOKENS - 1)]
    ref = jnp.where(special[..., None], rep, ref)

    assert out.shape == (B, S, D) and out.dtype == jnp.float32
    # tolerance: the two-plane bf16 split reconstructs the f32 table to
    # ~2^-16 relative error; 1e-4 is tight enough to catch any wrong-row bug.
    assert jnp.allclose(out, ref, rtol=1e-4, atol=1e-4), "mismatch vs reference"
    print("KERNEL_OK")
</pallas_src>

<mosaic_0001>
module attributes {stable_mosaic.version = 11 : i64} {
  func.func @gather_kernel(%arg0: i32, %arg1: memref<2048x1xi32, #tpu.memory_space<vmem>>, %arg2: memref<128x128xbf16, #tpu.memory_space<vmem>>, %arg3: memref<128x128xbf16, #tpu.memory_space<vmem>>, %arg4: memref<512x128xf32, #tpu.memory_space<vmem>>) attributes {dimension_semantics = [#tpu.dimension_semantics<parallel>], iteration_bounds = array<i64: 4>, scalar_prefetch = 0 : i64, scratch_operands = 0 : i64, tpu.core_type = #tpu.core_type<tc>, window_params = [{pipeline_mode = #tpu.pipeline_mode<synchronous>, transform_indices = @transform_0, window_bounds = array<i64: 2048, 1>}, {pipeline_mode = #tpu.pipeline_mode<synchronous>, transform_indices = @transform_1, window_bounds = array<i64: 128, 128>}, {pipeline_mode = #tpu.pipeline_mode<synchronous>, transform_indices = @transform_2, window_bounds = array<i64: 128, 128>}, {transform_indices = @transform_3, window_bounds = array<i64: 512, 128>}]} {
    %0 = tpu.iota {dimensions = array<i32: 1>} : vector<128x128xi32>
    %c0 = arith.constant 0 : index
    %c0_0 = arith.constant 0 : index
    %1 = vector.load %arg2[%c0, %c0_0] : memref<128x128xbf16, #tpu.memory_space<vmem>>, vector<128x128xbf16>
    %c0_1 = arith.constant 0 : index
    %c0_2 = arith.constant 0 : index
    %2 = vector.load %arg3[%c0_1, %c0_2] : memref<128x128xbf16, #tpu.memory_space<vmem>>, vector<128x128xbf16>
    %c512_i32 = arith.constant 512 : i32
    %3 = arith.muli %arg0, %c512_i32 : i32
    %c0_i32 = arith.constant 0 : i32
    %4 = arith.addi %3, %c0_i32 : i32
    %5 = tpu.assume_multiple %4, 128 : i32
    %6 = arith.index_cast %5 : i32 to index
    %c0_3 = arith.constant 0 : index
    %7 = vector.load %arg1[%6, %c0_3] : memref<2048x1xi32, #tpu.memory_space<vmem>>, vector<128x1xi32>
    %8 = vector.broadcast %7 : vector<128x1xi32> to vector<128x128xi32>
    %9 = arith.cmpi eq, %0, %8 : vector<128x128xi32>
    %10 = arith.extui %9 : vector<128x128xi1> to vector<128x128xi32>
    %11 = arith.sitofp %10 : vector<128x128xi32> to vector<128x128xf32>
    %12 = arith.truncf %11 : vector<128x128xf32> to vector<128x128xbf16>
    %cst = arith.constant dense<0.000000e+00> : vector<128x128xf32>
    %13 = tpu.matmul %12, %1, %cst {dimension_numbers = #tpu.dot_dimension_numbers<[1], [0], [0], [1], [0, 0, 1, 1], [], []>} : vector<128x128xbf16>, vector<128x128xbf16>, vector<128x128xf32> -> vector<128x128xf32>
    %cst_4 = arith.constant dense<0.000000e+00> : vector<128x128xf32>
    %14 = tpu.matmul %12, %2, %cst_4 {dimension_numbers = #tpu.dot_dimension_numbers<[1], [0], [0], [1], [0, 0, 1, 1], [], []>} : vector<128x128xbf16>, vector<128x128xbf16>, vector<128x128xf32> -> vector<128x128xf32>
    %15 = arith.addf %13, %14 : vector<128x128xf32>
    %c0_5 = arith.constant 0 : index
    %c0_6 = arith.constant 0 : index
    %16 = vector.load %arg4[%c0_5, %c0_6] : memref<512x128xf32, #tpu.memory_space<vmem>>, vector<128x128xf32>
    tpu.vector_store %arg4[%c0_5, %c0_6], %15 {strides = array<i32>} : memref<512x128xf32, #tpu.memory_space<vmem>>, vector<128x128xf32>,
    %c128_i32 = arith.constant 128 : i32
    %17 = arith.addi %3, %c128_i32 : i32
    %18 = tpu.assume_multiple %17, 128 : i32
    %19 = arith.index_cast %18 : i32 to index
    %c0_7 = arith.constant 0 : index
    %20 = vector.load %arg1[%19, %c0_7] : memref<2048x1xi32, #tpu.memory_space<vmem>>, vector<128x1xi32>
    %21 = vector.broadcast %20 : vector<128x1xi32> to vector<128x128xi32>
    %22 = arith.cmpi eq, %0, %21 : vector<128x128xi32>
    %23 = arith.extui %22 : vector<128x128xi1> to vector<128x128xi32>
    %24 = arith.sitofp %23 : vector<128x128xi32> to vector<128x128xf32>
    %25 = arith.truncf %24 : vector<128x128xf32> to vector<128x128xbf16>
    %cst_8 = arith.constant dense<0.000000e+00> : vector<128x128xf32>
    %26 = tpu.matmul %25, %1, %cst_8 {dimension_numbers = #tpu.dot_dimension_numbers<[1], [0], [0], [1], [0, 0, 1, 1], [], []>} : vector<128x128xbf16>, vector<128x128xbf16>, vector<128x128xf32> -> vector<128x128xf32>
    %cst_9 = arith.constant dense<0.000000e+00> : vector<128x128xf32>
    %27 = tpu.matmul %25, %2, %cst_9 {dimension_numbers = #tpu.dot_dimension_numbers<[1], [0], [0], [1], [0, 0, 1, 1], [], []>} : vector<128x128xbf16>, vector<128x128xbf16>, vector<128x128xf32> -> vector<128x128xf32>
    %28 = arith.addf %26, %27 : vector<128x128xf32>
    %c128 = arith.constant 128 : index
    %c0_10 = arith.constant 0 : index
    %29 = vector.load %arg4[%c128, %c0_10] : memref<512x128xf32, #tpu.memory_space<vmem>>, vector<128x128xf32>
    tpu.vector_store %arg4[%c128, %c0_10], %28 {strides = array<i32>} : memref<512x128xf32, #tpu.memory_space<vmem>>, vector<128x128xf32>,
    %c256_i32 = arith.constant 256 : i32
    %30 = arith.addi %3, %c256_i32 : i32
    %31 = tpu.assume_multiple %30, 128 : i32
    %32 = arith.index_cast %31 : i32 to index
    %c0_11 = arith.constant 0 : index
    %33 = vector.load %arg1[%32, %c0_11] : memref<2048x1xi32, #tpu.memory_space<vmem>>, vector<128x1xi32>
    %34 = vector.broadcast %33 : vector<128x1xi32> to vector<128x128xi32>
    %35 = arith.cmpi eq, %0, %34 : vector<128x128xi32>
    %36 = arith.extui %35 : vector<128x128xi1> to vector<128x128xi32>
    %37 = arith.sitofp %36 : vector<128x128xi32> to vector<128x128xf32>
    %38 = arith.truncf %37 : vector<128x128xf32> to vector<128x128xbf16>
    %cst_12 = arith.constant dense<0.000000e+00> : vector<128x128xf32>
    %39 = tpu.matmul %38, %1, %cst_12 {dimension_numbers = #tpu.dot_dimension_numbers<[1], [0], [0], [1], [0, 0, 1, 1], [], []>} : vector<128x128xbf16>, vector<128x128xbf16>, vector<128x128xf32> -> vector<128x128xf32>
    %cst_13 = arith.constant dense<0.000000e+00> : vector<128x128xf32>
    %40 = tpu.matmul %38, %2, %cst_13 {dimension_numbers = #tpu.dot_dimension_numbers<[1], [0], [0], [1], [0, 0, 1, 1], [], []>} : vector<128x128xbf16>, vector<128x128xbf16>, vector<128x128xf32> -> vector<128x128xf32>
    %41 = arith.addf %39, %40 : vector<128x128xf32>
    %c256 = arith.constant 256 : index
    %c0_14 = arith.constant 0 : index
    %42 = vector.load %arg4[%c256, %c0_14] : memref<512x128xf32, #tpu.memory_space<vmem>>, vector<128x128xf32>
    tpu.vector_store %arg4[%c256, %c0_14], %41 {strides = array<i32>} : memref<512x128xf32, #tpu.memory_space<vmem>>, vector<128x128xf32>,
    %c384_i32 = arith.constant 384 : i32
    %43 = arith.addi %3, %c384_i32 : i32
    %44 = tpu.assume_multiple %43, 128 : i32
    %45 = arith.index_cast %44 : i32 to index
    %c0_15 = arith.constant 0 : index
    %46 = vector.load %arg1[%45, %c0_15] : memref<2048x1xi32, #tpu.memory_space<vmem>>, vector<128x1xi32>
    %47 = vector.broadcast %46 : vector<128x1xi32> to vector<128x128xi32>
    %48 = arith.cmpi eq, %0, %47 : vector<128x128xi32>
    %49 = arith.extui %48 : vector<128x128xi1> to vector<128x128xi32>
    %50 = arith.sitofp %49 : vector<128x128xi32> to vector<128x128xf32>
    %51 = arith.truncf %50 : vector<128x128xf32> to vector<128x128xbf16>
    %cst_16 = arith.constant dense<0.000000e+00> : vector<128x128xf32>
    %52 = tpu.matmul %51, %1, %cst_16 {dimension_numbers = #tpu.dot_dimension_numbers<[1], [0], [0], [1], [0, 0, 1, 1], [], []>} : vector<128x128xbf16>, vector<128x128xbf16>, vector<128x128xf32> -> vector<128x128xf32>
    %cst_17 = arith.constant dense<0.000000e+00> : vector<128x128xf32>
    %53 = tpu.matmul %51, %2, %cst_17 {dimension_numbers = #tpu.dot_dimension_numbers<[1], [0], [0], [1], [0, 0, 1, 1], [], []>} : vector<128x128xbf16>, vector<128x128xbf16>, vector<128x128xf32> -> vector<128x128xf32>
    %54 = arith.addf %52, %53 : vector<128x128xf32>
    %c384 = arith.constant 384 : index
    %c0_18 = arith.constant 0 : index
    %55 = vector.load %arg4[%c384, %c0_18] : memref<512x128xf32, #tpu.memory_space<vmem>>, vector<128x128xf32>
    tpu.vector_store %arg4[%c384, %c0_18], %54 {strides = array<i32>} : memref<512x128xf32, #tpu.memory_space<vmem>>, vector<128x128xf32>,
    return
  }
  func.func @transform_0(%arg0: i32) -> (i32, i32) {
    %c0_i32 = arith.constant 0 : i32
    %c0_i32_0 = arith.constant 0 : i32
    %c0_i32_1 = arith.constant 0 : i32
    return %c0_i32, %c0_i32_0 : i32, i32
  }
  func.func @transform_1(%arg0: i32) -> (i32, i32) {
    %c0_i32 = arith.constant 0 : i32
    %c0_i32_0 = arith.constant 0 : i32
    %c0_i32_1 = arith.constant 0 : i32
    return %c0_i32, %c0_i32_0 : i32, i32
  }
  func.func @transform_2(%arg0: i32) -> (i32, i32) {
    %c0_i32 = arith.constant 0 : i32
    %c0_i32_0 = arith.constant 0 : i32
    %c0_i32_1 = arith.constant 0 : i32
    return %c0_i32, %c0_i32_0 : i32, i32
  }
  func.func @transform_3(%arg0: i32) -> (i32, i32) {
    %c0_i32 = arith.constant 0 : i32
    %c0_i32_0 = arith.constant 0 : i32
    return %arg0, %c0_i32 : i32, i32
  }
}

</mosaic_0001>

<llo_original>
// kernel: tpu_custom_call.1
$region0: #{tpu_custom_call.1}
  #allocation0 [shape = 'u32[]', space=smem, size = 0x4, offset = 0x4, fixed_abs, tag = 'smem constant byte address 0x4 - core index']
  #allocation1 [shape = 'u32[144,128]{1,0:T(1,128)}', space=vmem, size = 0x12000, scoped, tag = 'internal scratch']
  %s0 = inlined_call_operand.vmem [shape: s32[2048,1], index: 0, kind: input, shape index: {}]
  %s1 = inlined_call_operand.vmem [shape: bf16[128,128], index: 1, kind: input, shape index: {}]
  %s2 = inlined_call_operand.vmem [shape: bf16[128,128], index: 2, kind: input, shape index: {}]
  %s3 = inlined_call_operand.hbm [shape: f32[2048,128], index: 3, kind: output, shape index: {}]
  %s4 = sld [smem:[#allocation0]]
  $region45: #{tpu_custom_call.1} parent=0
    _
  %s6 = ssub.s32 1, %s4
  %s7 = scalar_select 0, %s6, %s4
  $region1: #{tpu_custom_call.1} parent=0
    #allocation2 [shape = 'u8[524288]{0}', space=vmem, size = 0x80000, scoped, tag = 'output window, operand 0']
    #allocation3 [shape = 's32[2]{0}', space=sflag, size = 0x8, scoped, tag = 'scoped memory for tpu_custom_call.1']
    %8 = vsyncpa [#allocation3], 0
    %s9 = scalar_lea.sflag [#allocation3], 1
    %10 = vsyncpa %s9, 0
    loop: start=0, step=1, limit=6
    $region2: #{tpu_custom_call.1} parent=1 // loop_pre_header
      _
    $region3: #{tpu_custom_call.1} parent=1 // loop_header
      %s12 = sphi 0, %s16
      %p13 = scmp.ge.s32.totalorder %s12, 6
      %s20 = sphi 0, %s20
      %s22 = sphi 0, %s20
      %s23 = sphi 0, %s22
      %s37 = sphi 0, %s23
      %s41 = sphi 0, %s41
      %s43 = sphi 0, %s41
      %s44 = sphi 0, %s43
      %s58 = sphi 0, %s44
      %s62 = sphi 0, %s62
      %s64 = sphi 0, %s62
      %s65 = sphi 0, %s64
      %s79 = sphi 0, %s65
      %s85 = sphi 0, %s87
      %s88 = sphi 0, %s85
      %s89 = sphi 0, %s88
      %s105 = sphi 0, %s89
    $region4: #{tpu_custom_call.1} parent=1 // loop_header_branch
      %15 = sbr.rel (%p13) target = $region8
    $region5: #{tpu_custom_call.1} parent=1 // loop_body
      %s17 = ssub.s32 %s12, 1
      %s18 = ssub.s32 %s12, 2
      %s19 = sadd.s32 %s12, 1
      %s21 = sadd.s32 %s20, 1
      %p24 = scmp.eq.s32.totalorder %s12, 3
      %p25 = scmp.ne.s32.totalorder %s20, %s22
      %p26 = scmp.eq.s32.totalorder %s12, 0
      %p27 = por %p25, %p26
      %p28 = scmp.ne.s32.totalorder %s20, %s22
      %p29 = scmp.eq.s32.totalorder %s17, 3
      %p30 = por %p28, %p29
      %p31 = scmp.ne.s32.totalorder %s22, %s23
      %p32 = scmp.eq.s32.totalorder %s17, 0
      %p33 = por %p31, %p32
      %p34 = scmp.ne.s32.totalorder %s22, %s23
      %p35 = scmp.eq.s32.totalorder %s18, 3
      %p36 = por %p34, %p35
      %p38 = scmp.ne.s32.totalorder %s23, %s37
      %p39 = scmp.eq.s32.totalorder %s18, 0
      %p40 = por %p38, %p39
      %s42 = sadd.s32 %s41, 1
      %p45 = scmp.eq.s32.totalorder %s12, 3
      %p46 = scmp.ne.s32.totalorder %s41, %s43
      %p47 = scmp.eq.s32.totalorder %s12, 0
      %p48 = por %p46, %p47
      %p49 = scmp.ne.s32.totalorder %s41, %s43
      %p50 = scmp.eq.s32.totalorder %s17, 3
      %p51 = por %p49, %p50
      %p52 = scmp.ne.s32.totalorder %s43, %s44
      %p53 = scmp.eq.s32.totalorder %s17, 0
      %p54 = por %p52, %p53
      %p55 = scmp.ne.s32.totalorder %s43, %s44
      %p56 = scmp.eq.s32.totalorder %s18, 3
      %p57 = por %p55, %p56
      %p59 = scmp.ne.s32.totalorder %s44, %s58
      %p60 = scmp.eq.s32.totalorder %s18, 0
      %p61 = por %p59, %p60
      %s63 = sadd.s32 %s62, 1
      %p66 = scmp.eq.s32.totalorder %s12, 3
      %p67 = scmp.ne.s32.totalorder %s62, %s64
      %p68 = scmp.eq.s32.totalorder %s12, 0
      %p69 = por %p67, %p68
      %p70 = scmp.ne.s32.totalorder %s62, %s64
      %p71 = scmp.eq.s32.totalorder %s17, 3
      %p72 = por %p70, %p71
      %p73 = scmp.ne.s32.totalorder %s64, %s65
      %p74 = scmp.eq.s32.totalorder %s17, 0
      %p75 = por %p73, %p74
      %p76 = scmp.ne.s32.totalorder %s64, %s65
      %p77 = scmp.eq.s32.totalorder %s18, 3
      %p78 = por %p76, %p77
      %p80 = scmp.ne.s32.totalorder %s65, %s79
      %p81 = scmp.eq.s32.totalorder %s18, 0
      %p82 = por %p80, %p81
      %s83 = ssub.s32 %s12, %s19
      %p84 = scmp.eq.s32.totalorder %s83, 0
      %s86 = sadd.s32 %s85, 1
      %s87 = scalar_select %p84, %s85, %s86
      %p90 = pneg %p84
      %p91 = scmp.eq.s32.totalorder %s12, 3
      %p92 = por %p90, %p91
      %p93 = scmp.ne.s32.totalorder %s85, %s88
      %p94 = scmp.eq.s32.totalorder %s12, 0
      %p95 = por %p93, %p94
      %p96 = scmp.ne.s32.totalorder %s85, %s88
      %p97 = scmp.eq.s32.totalorder %s17, 3
      %p98 = por %p96, %p97
      %p99 = scmp.ne.s32.totalorder %s88, %s89
      %p100 = scmp.eq.s32.totalorder %s17, 0
      %p101 = por %p99, %p100
      %p102 = scmp.ne.s32.totalorder %s88, %s89
      %p103 = scmp.eq.s32.totalorder %s18, 3
      %p104 = por %p102, %p103
      %p106 = scmp.ne.s32.totalorder %s89, %s105
      %p107 = scmp.eq.s32.totalorder %s18, 0
      %p108 = por %p106, %p107
      %p109 = scmp.le.s32.totalorder 1, %s12
      %p110 = scmp.lt.s32.totalorder %s12, 5
      %p111 = pnand %p109, %p110
      %p112 = pneg %p111
      // Predicated region
      $region9: #{tpu_custom_call.1} parent=5 // pred_check
        _
      $region10: #{tpu_custom_call.1} parent=5 // pred_check_branch
        %114 = sbr.rel (%p111) target = $region12
      $region11: #{tpu_custom_call.1} parent=5 // pred_region
        %s115 = ssub.s32 %s12, 1
        // Predicated region
        $region13: #{tpu_custom_call.1} parent=11 // pred_check
          %p116 = pneg %p33
        $region14: #{tpu_custom_call.1} parent=11 // pred_check_branch
          %118 = sbr.rel (%p116) target = $region16
        $region15: #{tpu_custom_call.1} parent=11 // pred_region
          _
        $region16: #{tpu_custom_call.1} parent=11 // pred_fallthru
          _
        // Predicated region
        $region17: #{tpu_custom_call.1} parent=11 // pred_check
          %p119 = pneg %p54
        $region18: #{tpu_custom_call.1} parent=11 // pred_check_branch
          %121 = sbr.rel (%p119) target = $region20
        $region19: #{tpu_custom_call.1} parent=11 // pred_region
          _
        $region20: #{tpu_custom_call.1} parent=11 // pred_fallthru
          _
        // Predicated region
        $region21: #{tpu_custom_call.1} parent=11 // pred_check
          %p122 = pneg %p75
        $region22: #{tpu_custom_call.1} parent=11 // pred_check_branch
          %124 = sbr.rel (%p122) target = $region24
        $region23: #{tpu_custom_call.1} parent=11 // pred_region
          _
        $region24: #{tpu_custom_call.1} parent=11 // pred_fallthru
          _
      $region12: #{tpu_custom_call.1} parent=5 // pred_fallthru
        _
      %p125 = scmp.lt.s32.totalorder %s12, 4
      // Predicated region
      $region25: #{tpu_custom_call.1} parent=5 // pred_check
        %p126 = pneg %p125
      $region26: #{tpu_custom_call.1} parent=5 // pred_check_branch
        %128 = sbr.rel (%p126) target = $region28
      $region27: #{tpu_custom_call.1} parent=5 // pred_region
        _
      $region28: #{tpu_custom_call.1} parent=5 // pred_fallthru
        _
      %p129 = scmp.le.s32.totalorder 1, %s12
      %p130 = scmp.lt.s32.totalorder %s12, 5
      %p131 = pnand %p129, %p130
      %p132 = pneg %p131
      // Predicated region
      $region29: #{tpu_custom_call.1} parent=5 // pred_check
        _
      $region30: #{tpu_custom_call.1} parent=5 // pred_check_branch
        %134 = sbr.rel (%p131) target = $region32
      $region31: #{tpu_custom_call.1} parent=5 // pred_region
        %s135 = ssub.s32 %s12, 1
        %p136 = pneg %p33
        %p137 = pneg %p30
        %p138 = pneg %p54
        %p139 = pneg %p51
        %p140 = pneg %p75
        %p141 = pneg %p72
        %p142 = pneg %p101
        %p143 = pneg %p98
        %s144 = sand.u32 %s88, 1
        %s145 = scalar_lea.sflag [#allocation3], %s144
        %s146 = sand.u32 %s88, 1
        %s147 = smul.addr %s146, 512
        %s148 = scalar_lea.vmem [#allocation2], %s147
        %s149 = smul.u32 64, %s17
        %v151 = vlaneseq
        %v152 = vand.u32 %v151, 127
        %v153 = vld [vmem:[%s1] sm:$0xf]
        %v154 = vld [vmem:[%s1 + $0x4] sm:$0xf]
        %v155 = vld [vmem:[%s1 + $0x8] sm:$0xf]
        %v156 = vld [vmem:[%s1 + $0xc] sm:$0xf]
        %v157 = vld [vmem:[%s1 + $0x10] sm:$0xf]
        %v158 = vld [vmem:[%s1 + $0x14] sm:$0xf]
        %v159 = vld [vmem:[%s1 + $0x18] sm:$0xf]
        %v160 = vld [vmem:[%s1 + $0x1c] sm:$0xf]
        %v161 = vld [vmem:[%s1 + $0x20] sm:$0xf]
        %v162 = vld [vmem:[%s1 + $0x24] sm:$0xf]
        %v163 = vld [vmem:[%s1 + $0x28] sm:$0xf]
        %v164 = vld [vmem:[%s1 + $0x2c] sm:$0xf]
        %v165 = vld [vmem:[%s1 + $0x30] sm:$0xf]
        %v166 = vld [vmem:[%s1 + $0x34] sm:$0xf]
        %v167 = vld [vmem:[%s1 + $0x38] sm:$0xf]
        %v168 = vld [vmem:[%s1 + $0x3c] sm:$0xf]
        %v169 = vld [vmem:[%s2] sm:$0xf]
        %v170 = vld [vmem:[%s2 + $0x4] sm:$0xf]
        %v171 = vld [vmem:[%s2 + $0x8] sm:$0xf]
        %v172 = vld [vmem:[%s2 + $0xc] sm:$0xf]
        %v173 = vld [vmem:[%s2 + $0x10] sm:$0xf]
        %v174 = vld [vmem:[%s2 + $0x14] sm:$0xf]
        %v175 = vld [vmem:[%s2 + $0x18] sm:$0xf]
        %v176 = vld [vmem:[%s2 + $0x1c] sm:$0xf]
        %v177 = vld [vmem:[%s2 + $0x20] sm:$0xf]
        %v178 = vld [vmem:[%s2 + $0x24] sm:$0xf]
        %v179 = vld [vmem:[%s2 + $0x28] sm:$0xf]
        %v180 = vld [vmem:[%s2 + $0x2c] sm:$0xf]
        %v181 = vld [vmem:[%s2 + $0x30] sm:$0xf]
        %v182 = vld [vmem:[%s2 + $0x34] sm:$0xf]
        %v183 = vld [vmem:[%s2 + $0x38] sm:$0xf]
        %v184 = vld [vmem:[%s2 + $0x3c] sm:$0xf]
        %s185 = smul.u32 %s17, 512
        %s186 = scalar_lea.vmem %s0, %s185
        %v187 = vld [vmem:[%s186] sm:$0xff]
        %v188 = vld [vmem:[%s186 + $0x8] sm:$0xff]
        %v189 = vld [vmem:[%s186 + $0x10] sm:$0xff]
        %v190 = vld [vmem:[%s186 + $0x18] sm:$0xff]
        %v191 = vld [vmem:[%s186 + $0x20] sm:$0xff]
        %v192 = vld [vmem:[%s186 + $0x28] sm:$0xff]
        %v193 = vld [vmem:[%s186 + $0x30] sm:$0xff]
        %v194 = vld [vmem:[%s186 + $0x38] sm:$0xff]
        %v195 = vld [vmem:[%s186 + $0x40] sm:$0xff]
        %v196 = vld [vmem:[%s186 + $0x48] sm:$0xff]
        %v197 = vld [vmem:[%s186 + $0x50] sm:$0xff]
        %v198 = vld [vmem:[%s186 + $0x58] sm:$0xff]
        %v199 = vld [vmem:[%s186 + $0x60] sm:$0xff]
        %v200 = vld [vmem:[%s186 + $0x68] sm:$0xff]
        %v201 = vld [vmem:[%s186 + $0x70] sm:$0xff]
        %v202 = vld [vmem:[%s186 + $0x78] sm:$0xff]
        %203 = vset.pattern.permute.xlu0 0
        %204 = vperm.xlu0 %203, %v187
        %v205 = vpop.permute.xlu0 %204
        %206 = vset.pattern.permute.xlu0 0
        %207 = vperm.xlu0 %206, %v188
        %v208 = vpop.permute.xlu0 %207
        %209 = vset.pattern.permute.xlu0 0
        %210 = vperm.xlu0 %209, %v189
        %v211 = vpop.permute.xlu0 %210
        %212 = vset.pattern.permute.xlu0 0
        %213 = vperm.xlu0 %212, %v190
        %v214 = vpop.permute.xlu0 %213
        %215 = vset.pattern.permute.xlu0 0
        %216 = vperm.xlu0 %215, %v191
        %v217 = vpop.permute.xlu0 %216
        %218 = vset.pattern.permute.xlu0 0
        %219 = vperm.xlu0 %218, %v192
        %v220 = vpop.permute.xlu0 %219
        %221 = vset.pattern.permute.xlu0 0
        %222 = vperm.xlu0 %221, %v193
        %v223 = vpop.permute.xlu0 %222
        %224 = vset.pattern.permute.xlu0 0
        %225 = vperm.xlu0 %224, %v194
        %v226 = vpop.permute.xlu0 %225
        %227 = vset.pattern.permute.xlu0 0
        %228 = vperm.xlu0 %227, %v195
        %v229 = vpop.permute.xlu0 %228
        %230 = vset.pattern.permute.xlu0 0
        %231 = vperm.xlu0 %230, %v196
        %v232 = vpop.permute.xlu0 %231
        %233 = vset.pattern.permute.xlu0 0
        %234 = vperm.xlu0 %233, %v197
        %v235 = vpop.permute.xlu0 %234
        %236 = vset.pattern.permute.xlu0 0
        %237 = vperm.xlu0 %236, %v198
        %v238 = vpop.permute.xlu0 %237
        %239 = vset.pattern.permute.xlu0 0
        %240 = vperm.xlu0 %239, %v199
        %v241 = vpop.permute.xlu0 %240
        %242 = vset.pattern.permute.xlu0 0
        %243 = vperm.xlu0 %242, %v200
        %v244 = vpop.permute.xlu0 %243
        %245 = vset.pattern.permute.xlu0 0
        %246 = vperm.xlu0 %245, %v201
        %v247 = vpop.permute.xlu0 %246
        %248 = vset.pattern.permute.xlu0 0
        %249 = vperm.xlu0 %248, %v202
        %v250 = vpop.permute.xlu0 %249
        %vm251 = vcmp.eq.s32.totalorder %v152, %v205
        %vm252 = vcmp.eq.s32.totalorder %v152, %v208
        %vm253 = vcmp.eq.s32.totalorder %v152, %v211
        %vm254 = vcmp.eq.s32.totalorder %v152, %v214
        %vm255 = vcmp.eq.s32.totalorder %v152, %v217
        %vm256 = vcmp.eq.s32.totalorder %v152, %v220
        %vm257 = vcmp.eq.s32.totalorder %v152, %v223
        %vm258 = vcmp.eq.s32.totalorder %v152, %v226
        %vm259 = vcmp.eq.s32.totalorder %v152, %v229
        %vm260 = vcmp.eq.s32.totalorder %v152, %v232
        %vm261 = vcmp.eq.s32.totalorder %v152, %v235
        %vm262 = vcmp.eq.s32.totalorder %v152, %v238
        %vm263 = vcmp.eq.s32.totalorder %v152, %v241
        %vm264 = vcmp.eq.s32.totalorder %v152, %v244
        %vm265 = vcmp.eq.s32.totalorder %v152, %v247
        %vm266 = vcmp.eq.s32.totalorder %v152, %v250
        %v267 = vsel %vm251, 1, 0
        %v268 = vsel %vm252, 1, 0
        %v269 = vsel %vm253, 1, 0
        %v270 = vsel %vm254, 1, 0
        %v271 = vsel %vm255, 1, 0
        %v272 = vsel %vm256, 1, 0
        %v273 = vsel %vm257, 1, 0
        %v274 = vsel %vm258, 1, 0
        %v275 = vsel %vm259, 1, 0
        %v276 = vsel %vm260, 1, 0
        %v277 = vsel %vm261, 1, 0
        %v278 = vsel %vm262, 1, 0
        %v279 = vsel %vm263, 1, 0
        %v280 = vsel %vm264, 1, 0
        %v281 = vsel %vm265, 1, 0
        %v282 = vsel %vm266, 1, 0
        %v283 = vcvt.s32.f32 %v267
        %v284 = vcvt.s32.f32 %v268
        %v285 = vcvt.s32.f32 %v269
        %v286 = vcvt.s32.f32 %v270
        %v287 = vcvt.s32.f32 %v271
        %v288 = vcvt.s32.f32 %v272
        %v289 = vcvt.s32.f32 %v273
        %v290 = vcvt.s32.f32 %v274
        %v291 = vcvt.s32.f32 %v275
        %v292 = vcvt.s32.f32 %v276
        %v293 = vcvt.s32.f32 %v277
        %v294 = vcvt.s32.f32 %v278
        %v295 = vcvt.s32.f32 %v279
        %v296 = vcvt.s32.f32 %v280
        %v297 = vcvt.s32.f32 %v281
        %v298 = vcvt.s32.f32 %v282
        %v299 = vpack.c.bf16 %v284, %v283
        %v300 = vpack.c.bf16 %v286, %v285
        %v301 = vpack.c.bf16 %v288, %v287
        %v302 = vpack.c.bf16 %v290, %v289
        %v303 = vpack.c.bf16 %v292, %v291
        %v304 = vpack.c.bf16 %v294, %v293
        %v305 = vpack.c.bf16 %v296, %v295
        %v306 = vpack.c.bf16 %v298, %v297
        %v323 = vunpack.c.l.b16 %v169
        %v324 = vunpack.c.l.b16 %v170
        %v325 = vunpack.c.l.b16 %v171
        %v326 = vunpack.c.l.b16 %v172
        %v327 = vunpack.c.l.b16 %v173
        %v328 = vunpack.c.l.b16 %v174
        %v329 = vunpack.c.l.b16 %v175
        %v330 = vunpack.c.l.b16 %v176
        %v331 = vunpack.c.l.b16 %v177
        %v332 = vunpack.c.l.b16 %v178
        %v333 = vunpack.c.l.b16 %v179
        %v334 = vunpack.c.l.b16 %v180
        %v335 = vunpack.c.l.b16 %v181
        %v336 = vunpack.c.l.b16 %v182
        %v337 = vunpack.c.l.b16 %v183
        %v338 = vunpack.c.l.b16 %v184
        %v339 = vpack.c.b16 %v324, %v323
        %v340 = vpack.c.b16 %v326, %v325
        %v341 = vpack.c.b16 %v328, %v327
        %v342 = vpack.c.b16 %v330, %v329
        %v343 = vpack.c.b16 %v332, %v331
        %v344 = vpack.c.b16 %v334, %v333
        %v345 = vpack.c.b16 %v336, %v335
        %v346 = vpack.c.b16 %v338, %v337
        %355 = vmatprep.subr.bf16.mxu0 0
        %356 = vmatpush1.bf16.msra.mxu0 %v339
        %357 = vmatprep.subr.bf16.mxu0 0
        %358 = vmatpush1.bf16.msra.mxu0 %v340
        %359 = vmatprep.subr.bf16.mxu0 0
        %360 = vmatpush1.bf16.msra.mxu0 %v341
        %361 = vmatprep.subr.bf16.mxu0 0
        %362 = vmatpush1.bf16.msra.mxu0 %v342
        %363 = vmatprep.subr.bf16.mxu0 0
        %364 = vmatpush1.bf16.msra.mxu0 %v343
        %365 = vmatprep.subr.bf16.mxu0 0
        %366 = vmatpush1.bf16.msra.mxu0 %v344
        %367 = vmatprep.subr.bf16.mxu0 0
        %368 = vmatpush1.bf16.msra.mxu0 %v345
        %369 = vmatprep.subr.bf16.mxu0 0
        %370 = vmatpush1.bf16.msra.mxu0 %v346
        %371 = vmatprep.subr.bf16.mxu0 0
        %372 = vmatpush1.bf16.msra.mxu0 0
        %373 = vmatprep.subr.bf16.mxu0 0
        %374 = vmatpush1.bf16.msra.mxu0 0
        %375 = vmatprep.subr.bf16.mxu0 0
        %376 = vmatpush1.bf16.msra.mxu0 0
        %377 = vmatprep.subr.bf16.mxu0 0
        %378 = vmatpush1.bf16.msra.mxu0 0
        %379 = vmatprep.subr.bf16.mxu0 0
        %380 = vmatpush1.bf16.msra.mxu0 0
        %381 = vmatprep.subr.bf16.mxu0 0
        %382 = vmatpush1.bf16.msra.mxu0 0
        %383 = vmatprep.subr.bf16.mxu0 0
        %384 = vmatpush1.bf16.msra.mxu0 0
        %385 = vmatprep.subr.bf16.mxu0 0
        %386 = vmatpush1.bf16.msra.mxu0 0
        %387 = vmatprep.mubr.bf16.mxu0 0
        %388 = vmatmul.mubr.bf16.gmra.mrb[0].mxu0 %v299
        %v389 = vpop.f32.mrb[0].mxu0
        %v390 = vadd.f32 0.0, %v389
        %v391 = vpop.f32.mrb[0].mxu0
        %v392 = vpop.f32.mrb[0].mxu0
        %v393 = vadd.f32 0.0, %v392
        %v394 = vpop.f32.mrb[0].mxu0
        %395 = vmatprep.mubr.bf16.mxu0 0
        %396 = vmatmul.mubr.bf16.gmra.mrb[0].mxu0 %v300
        %v397 = vpop.f32.mrb[0].mxu0
        %v398 = vadd.f32 0.0, %v397
        %v399 = vpop.f32.mrb[0].mxu0
        %v400 = vpop.f32.mrb[0].mxu0
        %v401 = vadd.f32 0.0, %v400
        %v402 = vpop.f32.mrb[0].mxu0
        %403 = vmatprep.mubr.bf16.mxu0 0
        %404 = vmatmul.mubr.bf16.gmra.mrb[0].mxu0 %v301
        %v405 = vpop.f32.mrb[0].mxu0
        %v406 = vadd.f32 0.0, %v405
        %v407 = vpop.f32.mrb[0].mxu0
        %v408 = vpop.f32.mrb[0].mxu0
        %v409 = vadd.f32 0.0, %v408
        %v410 = vpop.f32.mrb[0].mxu0
        %411 = vmatprep.mubr.bf16.mxu0 0
        %412 = vmatmul.mubr.bf16.gmra.mrb[0].mxu0 %v302
        %v413 = vpop.f32.mrb[0].mxu0
        %v414 = vadd.f32 0.0, %v413
        %v415 = vpop.f32.mrb[0].mxu0
        %v416 = vpop.f32.mrb[0].mxu0
        %v417 = vadd.f32 0.0, %v416
        %v418 = vpop.f32.mrb[0].mxu0
        %419 = vmatprep.mubr.bf16.mxu0 0
        %420 = vmatmul.mubr.bf16.gmra.mrb[0].mxu0 %v303
        %v421 = vpop.f32.mrb[0].mxu0
        %v422 = vadd.f32 0.0, %v421
        %v423 = vpop.f32.mrb[0].mxu0
        %v424 = vpop.f32.mrb[0].mxu0
        %v425 = vadd.f32 0.0, %v424
        %v426 = vpop.f32.mrb[0].mxu0
        %427 = vmatprep.mubr.bf16.mxu0 0
        %428 = vmatmul.mubr.bf16.gmra.mrb[0].mxu0 %v304
        %v429 = vpop.f32.mrb[0].mxu0
        %v430 = vadd.f32 0.0, %v429
        %v431 = vpop.f32.mrb[0].mxu0
        %v432 = vpop.f32.mrb[0].mxu0
        %v433 = vadd.f32 0.0, %v432
        %v434 = vpop.f32.mrb[0].mxu0
        %435 = vmatprep.mubr.bf16.mxu0 0
        %436 = vmatmul.mubr.bf16.gmra.mrb[0].mxu0 %v305
        %v437 = vpop.f32.mrb[0].mxu0
        %v438 = vadd.f32 0.0, %v437
        %v439 = vpop.f32.mrb[0].mxu0
        %v440 = vpop.f32.mrb[0].mxu0
        %v441 = vadd.f32 0.0, %v440
        %v442 = vpop.f32.mrb[0].mxu0
        %443 = vmatprep.mubr.bf16.mxu0 0
        %444 = vmatmul.mubr.bf16.gmra.mrb[0].mxu0 %v306
        %v445 = vpop.f32.mrb[0].mxu0
        %v446 = vadd.f32 0.0, %v445
        %v447 = vpop.f32.mrb[0].mxu0
        %v448 = vpop.f32.mrb[0].mxu0
        %v449 = vadd.f32 0.0, %v448
        %v450 = vpop.f32.mrb[0].mxu0
        %451 = vdwg.mxu0
        %v468 = vunpack.c.l.b16 %v153
        %v469 = vunpack.c.l.b16 %v154
        %v470 = vunpack.c.l.b16 %v155
        %v471 = vunpack.c.l.b16 %v156
        %v472 = vunpack.c.l.b16 %v157
        %v473 = vunpack.c.l.b16 %v158
        %v474 = vunpack.c.l.b16 %v159
        %v475 = vunpack.c.l.b16 %v160
        %v476 = vunpack.c.l.b16 %v161
        %v477 = vunpack.c.l.b16 %v162
        %v478 = vunpack.c.l.b16 %v163
        %v479 = vunpack.c.l.b16 %v164
        %v480 = vunpack.c.l.b16 %v165
        %v481 = vunpack.c.l.b16 %v166
        %v482 = vunpack.c.l.b16 %v167
        %v483 = vunpack.c.l.b16 %v168
        %v484 = vpack.c.b16 %v469, %v468
        %v485 = vpack.c.b16 %v471, %v470
        %v486 = vpack.c.b16 %v473, %v472
        %v487 = vpack.c.b16 %v475, %v474
        %v488 = vpack.c.b16 %v477, %v476
        %v489 = vpack.c.b16 %v479, %v478
        %v490 = vpack.c.b16 %v481, %v480
        %v491 = vpack.c.b16 %v483, %v482
        %500 = vmatprep.subr.bf16.mxu0 0
        %501 = vmatpush1.bf16.msra.mxu0 %v484
        %502 = vmatprep.subr.bf16.mxu0 0
        %503 = vmatpush1.bf16.msra.mxu0 %v485
        %504 = vmatprep.subr.bf16.mxu0 0
        %505 = vmatpush1.bf16.msra.mxu0 %v486
        %506 = vmatprep.subr.bf16.mxu0 0
        %507 = vmatpush1.bf16.msra.mxu0 %v487
        %508 = vmatprep.subr.bf16.mxu0 0
        %509 = vmatpush1.bf16.msra.mxu0 %v488
        %510 = vmatprep.subr.bf16.mxu0 0
        %511 = vmatpush1.bf16.msra.mxu0 %v489
        %512 = vmatprep.subr.bf16.mxu0 0
        %513 = vmatpush1.bf16.msra.mxu0 %v490
        %514 = vmatprep.subr.bf16.mxu0 0
        %515 = vmatpush1.bf16.msra.mxu0 %v491
        %516 = vmatprep.subr.bf16.mxu0 0
        %517 = vmatpush1.bf16.msra.mxu0 0
        %518 = vmatprep.subr.bf16.mxu0 0
        %519 = vmatpush1.bf16.msra.mxu0 0
        %520 = vmatprep.subr.bf16.mxu0 0
        %521 = vmatpush1.bf16.msra.mxu0 0
        %522 = vmatprep.subr.bf16.mxu0 0
        %523 = vmatpush1.bf16.msra.mxu0 0
        %524 = vmatprep.subr.bf16.mxu0 0
        %525 = vmatpush1.bf16.msra.mxu0 0
        %526 = vmatprep.subr.bf16.mxu0 0
        %527 = vmatpush1.bf16.msra.mxu0 0
        %528 = vmatprep.subr.bf16.mxu0 0
        %529 = vmatpush1.bf16.msra.mxu0 0
        %530 = vmatprep.subr.bf16.mxu0 0
        %531 = vmatpush1.bf16.msra.mxu0 0
        %532 = vmatprep.mubr.bf16.mxu0 0
        %533 = vmatmul.mubr.bf16.gmra.mrb[0].mxu0 %v299
        %v534 = vpop.f32.mrb[0].mxu0
        %v535 = vadd.f32 %v390, %v534
        %v536 = vpop.f32.mrb[0].mxu0
        %v537 = vpop.f32.mrb[0].mxu0
        %v538 = vadd.f32 %v393, %v537
        %v539 = vpop.f32.mrb[0].mxu0
        %540 = vmatprep.mubr.bf16.mxu0 0
        %541 = vmatmul.mubr.bf16.gmra.mrb[0].mxu0 %v300
        %v542 = vpop.f32.mrb[0].mxu0
        %v543 = vadd.f32 %v398, %v542
        %v544 = vpop.f32.mrb[0].mxu0
        %v545 = vpop.f32.mrb[0].mxu0
        %v546 = vadd.f32 %v401, %v545
        %v547 = vpop.f32.mrb[0].mxu0
        %548 = vmatprep.mubr.bf16.mxu0 0
        %549 = vmatmul.mubr.bf16.gmra.mrb[0].mxu0 %v301
        %v550 = vpop.f32.mrb[0].mxu0
        %v551 = vadd.f32 %v406, %v550
        %v552 = vpop.f32.mrb[0].mxu0
        %v553 = vpop.f32.mrb[0].mxu0
        %v554 = vadd.f32 %v409, %v553
        %v555 = vpop.f32.mrb[0].mxu0
        %556 = vmatprep.mubr.bf16.mxu0 0
        %557 = vmatmul.mubr.bf16.gmra.mrb[0].mxu0 %v302
        %v558 = vpop.f32.mrb[0].mxu0
        %v559 = vadd.f32 %v414, %v558
        %v560 = vpop.f32.mrb[0].mxu0
        %v561 = vpop.f32.mrb[0].mxu0
        %v562 = vadd.f32 %v417, %v561
        %v563 = vpop.f32.mrb[0].mxu0
        %564 = vmatprep.mubr.bf16.mxu0 0
        %565 = vmatmul.mubr.bf16.gmra.mrb[0].mxu0 %v303
        %v566 = vpop.f32.mrb[0].mxu0
        %v567 = vadd.f32 %v422, %v566
        %v568 = vpop.f32.mrb[0].mxu0
        %v569 = vpop.f32.mrb[0].mxu0
        %v570 = vadd.f32 %v425, %v569
        %v571 = vpop.f32.mrb[0].mxu0
        %572 = vmatprep.mubr.bf16.mxu0 0
        %573 = vmatmul.mubr.bf16.gmra.mrb[0].mxu0 %v304
        %v574 = vpop.f32.mrb[0].mxu0
        %v575 = vadd.f32 %v430, %v574
        %v576 = vpop.f32.mrb[0].mxu0
        %v577 = vpop.f32.mrb[0].mxu0
        %v578 = vadd.f32 %v433, %v577
        %v579 = vpop.f32.mrb[0].mxu0
        %580 = vmatprep.mubr.bf16.mxu0 0
        %581 = vmatmul.mubr.bf16.gmra.mrb[0].mxu0 %v305
        %v582 = vpop.f32.mrb[0].mxu0
        %v583 = vadd.f32 %v438, %v582
        %v584 = vpop.f32.mrb[0].mxu0
        %v585 = vpop.f32.mrb[0].mxu0
        %v586 = vadd.f32 %v441, %v585
        %v587 = vpop.f32.mrb[0].mxu0
        %588 = vmatprep.mubr.bf16.mxu0 0
        %589 = vmatmul.mubr.bf16.gmra.mrb[0].mxu0 %v306
        %v590 = vpop.f32.mrb[0].mxu0
        %v591 = vadd.f32 %v446, %v590
        %v592 = vpop.f32.mrb[0].mxu0
        %v593 = vpop.f32.mrb[0].mxu0
        %v594 = vadd.f32 %v449, %v593
        %v595 = vpop.f32.mrb[0].mxu0
        %596 = vdwg.mxu0
        %597 = vst [vmem:[%s148] sm:$0xff] %v535
        %598 = vst [vmem:[%s148 + $0x8] sm:$0xff] %v538
        %599 = vst [vmem:[%s148 + $0x10] sm:$0xff] %v543
        %600 = vst [vmem:[%s148 + $0x18] sm:$0xff] %v546
        %601 = vst [vmem:[%s148 + $0x20] sm:$0xff] %v551
        %602 = vst [vmem:[%s148 + $0x28] sm:$0xff] %v554
        %603 = vst [vmem:[%s148 + $0x30] sm:$0xff] %v559
        %604 = vst [vmem:[%s148 + $0x38] sm:$0xff] %v562
        %605 = vst [vmem:[%s148 + $0x40] sm:$0xff] %v567
        %606 = vst [vmem:[%s148 + $0x48] sm:$0xff] %v570
        %607 = vst [vmem:[%s148 + $0x50] sm:$0xff] %v575
        %608 = vst [vmem:[%s148 + $0x58] sm:$0xff] %v578
        %609 = vst [vmem:[%s148 + $0x60] sm:$0xff] %v583
        %610 = vst [vmem:[%s148 + $0x68] sm:$0xff] %v586
        %611 = vst [vmem:[%s148 + $0x70] sm:$0xff] %v591
        %612 = vst [vmem:[%s148 + $0x78] sm:$0xff] %v594
        %s613 = sadd.s32 %s185, 128
        %s614 = scalar_lea.vmem %s0, %s613
        %v615 = vld [vmem:[%s614] sm:$0xff]
        %v616 = vld [vmem:[%s614 + $0x8] sm:$0xff]
        %v617 = vld [vmem:[%s614 + $0x10] sm:$0xff]
        %v618 = vld [vmem:[%s614 + $0x18] sm:$0xff]
        %v619 = vld [vmem:[%s614 + $0x20] sm:$0xff]
        %v620 = vld [vmem:[%s614 + $0x28] sm:$0xff]
        %v621 = vld [vmem:[%s614 + $0x30] sm:$0xff]
        %v622 = vld [vmem:[%s614 + $0x38] sm:$0xff]
        %v623 = vld [vmem:[%s614 + $0x40] sm:$0xff]
        %v624 = vld [vmem:[%s614 + $0x48] sm:$0xff]
        %v625 = vld [vmem:[%s614 + $0x50] sm:$0xff]
        %v626 = vld [vmem:[%s614 + $0x58] sm:$0xff]
        %v627 = vld [vmem:[%s614 + $0x60] sm:$0xff]
        %v628 = vld [vmem:[%s614 + $0x68] sm:$0xff]
        %v629 = vld [vmem:[%s614 + $0x70] sm:$0xff]
        %v630 = vld [vmem:[%s614 + $0x78] sm:$0xff]
        %631 = vset.pattern.permute.xlu0 0
        %632 = vperm.xlu0 %631, %v615
        %v633 = vpop.permute.xlu0 %632
        %634 = vset.pattern.permute.xlu0 0
        %635 = vperm.xlu0 %634, %v616
        %v636 = vpop.permute.xlu0 %635
        %637 = vset.pattern.permute.xlu0 0
        %638 = vperm.xlu0 %637, %v617
        %v639 = vpop.permute.xlu0 %638
        %640 = vset.pattern.permute.xlu0 0
        %641 = vperm.xlu0 %640, %v618
        %v642 = vpop.permute.xlu0 %641
        %643 = vset.pattern.permute.xlu0 0
        %644 = vperm.xlu0 %643, %v619
        %v645 = vpop.permute.xlu0 %644
        %646 = vset.pattern.permute.xlu0 0
        %647 = vperm.xlu0 %646, %v620
        %v648 = vpop.permute.xlu0 %647
        %649 = vset.pattern.permute.xlu0 0
        %650 = vperm.xlu0 %649, %v621
        %v651 = vpop.permute.xlu0 %650
        %652 = vset.pattern.permute.xlu0 0
        %653 = vperm.xlu0 %652, %v622
        %v654 = vpop.permute.xlu0 %653
        %655 = vset.pattern.permute.xlu0 0
        %656 = vperm.xlu0 %655, %v623
        %v657 = vpop.permute.xlu0 %656
        %658 = vset.pattern.permute.xlu0 0
        %659 = vperm.xlu0 %658, %v624
        %v660 = vpop.permute.xlu0 %659
        %661 = vset.pattern.permute.xlu0 0
        %662 = vperm.xlu0 %661, %v625
        %v663 = vpop.permute.xlu0 %662
        %664 = vset.pattern.permute.xlu0 0
        %665 = vperm.xlu0 %664, %v626
        %v666 = vpop.permute.xlu0 %665
        %667 = vset.pattern.permute.xlu0 0
        %668 = vperm.xlu0 %667, %v627
        %v669 = vpop.permute.xlu0 %668
        %670 = vset.pattern.permute.xlu0 0
        %671 = vperm.xlu0 %670, %v628
        %v672 = vpop.permute.xlu0 %671
        %673 = vset.pattern.permute.xlu0 0
        %674 = vperm.xlu0 %673, %v629
        %v675 = vpop.permute.xlu0 %674
        %676 = vset.pattern.permute.xlu0 0
        %677 = vperm.xlu0 %676, %v630
        %v678 = vpop.permute.xlu0 %677
        %vm679 = vcmp.eq.s32.totalorder %v152, %v633
        %vm680 = vcmp.eq.s32.totalorder %v152, %v636
        %vm681 = vcmp.eq.s32.totalorder %v152, %v639
        %vm682 = vcmp.eq.s32.totalorder %v152, %v642
        %vm683 = vcmp.eq.s32.totalorder %v152, %v645
        %vm684 = vcmp.eq.s32.totalorder %v152, %v648
        %vm685 = vcmp.eq.s32.totalorder %v152, %v651
        %vm686 = vcmp.eq.s32.totalorder %v152, %v654
        %vm687 = vcmp.eq.s32.totalorder %v152, %v657
        %vm688 = vcmp.eq.s32.totalorder %v152, %v660
        %vm689 = vcmp.eq.s32.totalorder %v152, %v663
        %vm690 = vcmp.eq.s32.totalorder %v152, %v666
        %vm691 = vcmp.eq.s32.totalorder %v152, %v669
        %vm692 = vcmp.eq.s32.totalorder %v152, %v672
        %vm693 = vcmp.eq.s32.totalorder %v152, %v675
        %vm694 = vcmp.eq.s32.totalorder %v152, %v678
        %v695 = vsel %vm679, 1, 0
        %v696 = vsel %vm680, 1, 0
        %v697 = vsel %vm681, 1, 0
        %v698 = vsel %vm682, 1, 0
        %v699 = vsel %vm683, 1, 0
        %v700 = vsel %vm684, 1, 0
        %v701 = vsel %vm685, 1, 0
        %v702 = vsel %vm686, 1, 0
        %v703 = vsel %vm687, 1, 0
        %v704 = vsel %vm688, 1, 0
        %v705 = vsel %vm689, 1, 0
        %v706 = vsel %vm690, 1, 0
        %v707 = vsel %vm691, 1, 0
        %v708 = vsel %vm692, 1, 0
        %v709 = vsel %vm693, 1, 0
        %v710 = vsel %vm694, 1, 0
        %v711 = vcvt.s32.f32 %v695
        %v712 = vcvt.s32.f32 %v696
        %v713 = vcvt.s32.f32 %v697
        %v714 = vcvt.s32.f32 %v698
        %v715 = vcvt.s32.f32 %v699
        %v716 = vcvt.s32.f32 %v700
        %v717 = vcvt.s32.f32 %v701
        %v718 = vcvt.s32.f32 %v702
        %v719 = vcvt.s32.f32 %v703
        %v720 = vcvt.s32.f32 %v704
        %v721 = vcvt.s32.f32 %v705
        %v722 = vcvt.s32.f32 %v706
        %v723 = vcvt.s32.f32 %v707
        %v724 = vcvt.s32.f32 %v708
        %v725 = vcvt.s32.f32 %v709
        %v726 = vcvt.s32.f32 %v710
        %v727 = vpack.c.bf16 %v712, %v711
        %v728 = vpack.c.bf16 %v714, %v713
        %v729 = vpack.c.bf16 %v716, %v715
        %v730 = vpack.c.bf16 %v718, %v717
        %v731 = vpack.c.bf16 %v720, %v719
        %v732 = vpack.c.bf16 %v722, %v721
        %v733 = vpack.c.bf16 %v724, %v723
        %v734 = vpack.c.bf16 %v726, %v725
        %735 = vmatprep.subr.bf16.mxu0 0
        %736 = vmatpush1.bf16.msra.mxu0 %v339
        %737 = vmatprep.subr.bf16.mxu0 0
        %738 = vmatpush1.bf16.msra.mxu0 %v340
        %739 = vmatprep.subr.bf16.mxu0 0
        %740 = vmatpush1.bf16.msra.mxu0 %v341
        %741 = vmatprep.subr.bf16.mxu0 0
        %742 = vmatpush1.bf16.msra.mxu0 %v342
        %743 = vmatprep.subr.bf16.mxu0 0
        %744 = vmatpush1.bf16.msra.mxu0 %v343
        %745 = vmatprep.subr.bf16.mxu0 0
        %746 = vmatpush1.bf16.msra.mxu0 %v344
        %747 = vmatprep.subr.bf16.mxu0 0
        %748 = vmatpush1.bf16.msra.mxu0 %v345
        %749 = vmatprep.subr.bf16.mxu0 0
        %750 = vmatpush1.bf16.msra.mxu0 %v346
        %751 = vmatprep.subr.bf16.mxu0 0
        %752 = vmatpush1.bf16.msra.mxu0 0
        %753 = vmatprep.subr.bf16.mxu0 0
        %754 = vmatpush1.bf16.msra.mxu0 0
        %755 = vmatprep.subr.bf16.mxu0 0
        %756 = vmatpush1.bf16.msra.mxu0 0
        %757 = vmatprep.subr.bf16.mxu0 0
        %758 = vmatpush1.bf16.msra.mxu0 0
        %759 = vmatprep.subr.bf16.mxu0 0
        %760 = vmatpush1.bf16.msra.mxu0 0
        %761 = vmatprep.subr.bf16.mxu0 0
        %762 = vmatpush1.bf16.msra.mxu0 0
        %763 = vmatprep.subr.bf16.mxu0 0
        %764 = vmatpush1.bf16.msra.mxu0 0
        %765 = vmatprep.subr.bf16.mxu0 0
        %766 = vmatpush1.bf16.msra.mxu0 0
        %767 = vmatprep.mubr.bf16.mxu0 0
        %768 = vmatmul.mubr.bf16.gmra.mrb[0].mxu0 %v727
        %v769 = vpop.f32.mrb[0].mxu0
        %v770 = vadd.f32 0.0, %v769
        %v771 = vpop.f32.mrb[0].mxu0
        %v772 = vpop.f32.mrb[0].mxu0
        %v773 = vadd.f32 0.0, %v772
        %v774 = vpop.f32.mrb[0].mxu0
        %775 = vmatprep.mubr.bf16.mxu0 0
        %776 = vmatmul.mubr.bf16.gmra.mrb[0].mxu0 %v728
        %v777 = vpop.f32.mrb[0].mxu0
        %v778 = vadd.f32 0.0, %v777
        %v779 = vpop.f32.mrb[0].mxu0
        %v780 = vpop.f32.mrb[0].mxu0
        %v781 = vadd.f32 0.0, %v780
        %v782 = vpop.f32.mrb[0].mxu0
        %783 = vmatprep.mubr.bf16.mxu0 0
        %784 = vmatmul.mubr.bf16.gmra.mrb[0].mxu0 %v729
        %v785 = vpop.f32.mrb[0].mxu0
        %v786 = vadd.f32 0.0, %v785
        %v787 = vpop.f32.mrb[0].mxu0
        %v788 = vpop.f32.mrb[0].mxu0
        %v789 = vadd.f32 0.0, %v788
        %v790 = vpop.f32.mrb[0].mxu0
        %791 = vmatprep.mubr.bf16.mxu0 0
        %792 = vmatmul.mubr.bf16.gmra.mrb[0].mxu0 %v730
        %v793 = vpop.f32.mrb[0].mxu0
        %v794 = vadd.f32 0.0, %v793
        %v795 = vpop.f32.mrb[0].mxu0
        %v796 = vpop.f32.mrb[0].mxu0
        %v797 = vadd.f32 0.0, %v796
        %v798 = vpop.f32.mrb[0].mxu0
        %799 = vmatprep.mubr.bf16.mxu0 0
        %800 = vmatmul.mubr.bf16.gmra.mrb[0].mxu0 %v731
        %v801 = vpop.f32.mrb[0].mxu0
        %v802 = vadd.f32 0.0, %v801
        %v803 = vpop.f32.mrb[0].mxu0
        %v804 = vpop.f32.mrb[0].mxu0
        %v805 = vadd.f32 0.0, %v804
        %v806 = vpop.f32.mrb[0].mxu0
        %807 = vmatprep.mubr.bf16.mxu0 0
        %808 = vmatmul.mubr.bf16.gmra.mrb[0].mxu0 %v732
        %v809 = vpop.f32.mrb[0].mxu0
        %v810 = vadd.f32 0.0, %v809
        %v811 = vpop.f32.mrb[0].mxu0
        %v812 = vpop.f32.mrb[0].mxu0
        %v813 = vadd.f32 0.0, %v812
        %v814 = vpop.f32.mrb[0].mxu0
        %815 = vmatprep.mubr.bf16.mxu0 0
        %816 = vmatmul.mubr.bf16.gmra.mrb[0].mxu0 %v733
        %v817 = vpop.f32.mrb[0].mxu0
        %v818 = vadd.f32 0.0, %v817
        %v819 = vpop.f32.mrb[0].mxu0
        %v820 = vpop.f32.mrb[0].mxu0
        %v821 = vadd.f32 0.0, %v820
        %v822 = vpop.f32.mrb[0].mxu0
        %823 = vmatprep.mubr.bf16.mxu0 0
        %824 = vmatmul.mubr.bf16.gmra.mrb[0].mxu0 %v734
        %v825 = vpop.f32.mrb[0].mxu0
        %v826 = vadd.f32 0.0, %v825
        %v827 = vpop.f32.mrb[0].mxu0
        %v828 = vpop.f32.mrb[0].mxu0
        %v829 = vadd.f32 0.0, %v828
        %v830 = vpop.f32.mrb[0].mxu0
        %831 = vdwg.mxu0
        %832 = vmatprep.subr.bf16.mxu0 0
        %833 = vmatpush1.bf16.msra.mxu0 %v484
        %834 = vmatprep.subr.bf16.mxu0 0
        %835 = vmatpush1.bf16.msra.mxu0 %v485
        %836 = vmatprep.subr.bf16.mxu0 0
        %837 = vmatpush1.bf16.msra.mxu0 %v486
        %838 = vmatprep.subr.bf16.mxu0 0
        %839 = vmatpush1.bf16.msra.mxu0 %v487
        %840 = vmatprep.subr.bf16.mxu0 0
        %841 = vmatpush1.bf16.msra.mxu0 %v488
        %842 = vmatprep.subr.bf16.mxu0 0
        %843 = vmatpush1.bf16.msra.mxu0 %v489
        %844 = vmatprep.subr.bf16.mxu0 0
        %845 = vmatpush1.bf16.msra.mxu0 %v490
        %846 = vmatprep.subr.bf16.mxu0 0
        %847 = vmatpush1.bf16.msra.mxu0 %v491
        %848 = vmatprep.subr.bf16.mxu0 0
        %849 = vmatpush1.bf16.msra.mxu0 0
        %850 = vmatprep.subr.bf16.mxu0 0
        %851 = vmatpush1.bf16.msra.mxu0 0
        %852 = vmatprep.subr.bf16.mxu0 0
        %853 = vmatpush1.bf16.msra.mxu0 0
        %854 = vmatprep.subr.bf16.mxu0 0
        %855 = vmatpush1.bf16.msra.mxu0 0
        %856 = vmatprep.subr.bf16.mxu0 0
        %857 = vmatpush1.bf16.msra.mxu0 0
        %858 = vmatprep.subr.bf16.mxu0 0
        %859 = vmatpush1.bf16.msra.mxu0 0
        %860 = vmatprep.subr.bf16.mxu0 0
        %861 = vmatpush1.bf16.msra.mxu0 0
        %862 = vmatprep.subr.bf16.mxu0 0
        %863 = vmatpush1.bf16.msra.mxu0 0
        %864 = vmatprep.mubr.bf16.mxu0 0
        %865 = vmatmul.mubr.bf16.gmra.mrb[0].mxu0 %v727
        %v866 = vpop.f32.mrb[0].mxu0
        %v867 = vadd.f32 %v770, %v866
        %v868 = vpop.f32.mrb[0].mxu0
        %v869 = vpop.f32.mrb[0].mxu0
        %v870 = vadd.f32 %v773, %v869
        %v871 = vpop.f32.mrb[0].mxu0
        %872 = vmatprep.mubr.bf16.mxu0 0
        %873 = vmatmul.mubr.bf16.gmra.mrb[0].mxu0 %v728
        %v874 = vpop.f32.mrb[0].mxu0
        %v875 = vadd.f32 %v778, %v874
        %v876 = vpop.f32.mrb[0].mxu0
        %v877 = vpop.f32.mrb[0].mxu0
        %v878 = vadd.f32 %v781, %v877
        %v879 = vpop.f32.mrb[0].mxu0
        %880 = vmatprep.mubr.bf16.mxu0 0
        %881 = vmatmul.mubr.bf16.gmra.mrb[0].mxu0 %v729
        %v882 = vpop.f32.mrb[0].mxu0
        %v883 = vadd.f32 %v786, %v882
        %v884 = vpop.f32.mrb[0].mxu0
        %v885 = vpop.f32.mrb[0].mxu0
        %v886 = vadd.f32 %v789, %v885
        %v887 = vpop.f32.mrb[0].mxu0
        %888 = vmatprep.mubr.bf16.mxu0 0
        %889 = vmatmul.mubr.bf16.gmra.mrb[0].mxu0 %v730
        %v890 = vpop.f32.mrb[0].mxu0
        %v891 = vadd.f32 %v794, %v890
        %v892 = vpop.f32.mrb[0].mxu0
        %v893 = vpop.f32.mrb[0].mxu0
        %v894 = vadd.f32 %v797, %v893
        %v895 = vpop.f32.mrb[0].mxu0
        %896 = vmatprep.mubr.bf16.mxu0 0
        %897 = vmatmul.mubr.bf16.gmra.mrb[0].mxu0 %v731
        %v898 = vpop.f32.mrb[0].mxu0
        %v899 = vadd.f32 %v802, %v898
        %v900 = vpop.f32.mrb[0].mxu0
        %v901 = vpop.f32.mrb[0].mxu0
        %v902 = vadd.f32 %v805, %v901
        %v903 = vpop.f32.mrb[0].mxu0
        %904 = vmatprep.mubr.bf16.mxu0 0
        %905 = vmatmul.mubr.bf16.gmra.mrb[0].mxu0 %v732
        %v906 = vpop.f32.mrb[0].mxu0
        %v907 = vadd.f32 %v810, %v906
        %v908 = vpop.f32.mrb[0].mxu0
        %v909 = vpop.f32.mrb[0].mxu0
        %v910 = vadd.f32 %v813, %v909
        %v911 = vpop.f32.mrb[0].mxu0
        %912 = vmatprep.mubr.bf16.mxu0 0
        %913 = vmatmul.mubr.bf16.gmra.mrb[0].mxu0 %v733
        %v914 = vpop.f32.mrb[0].mxu0
        %v915 = vadd.f32 %v818, %v914
        %v916 = vpop.f32.mrb[0].mxu0
        %v917 = vpop.f32.mrb[0].mxu0
        %v918 = vadd.f32 %v821, %v917
        %v919 = vpop.f32.mrb[0].mxu0
        %920 = vmatprep.mubr.bf16.mxu0 0
        %921 = vmatmul.mubr.bf16.gmra.mrb[0].mxu0 %v734
        %v922 = vpop.f32.mrb[0].mxu0
        %v923 = vadd.f32 %v826, %v922
        %v924 = vpop.f32.mrb[0].mxu0
        %v925 = vpop.f32.mrb[0].mxu0
        %v926 = vadd.f32 %v829, %v925
        %v927 = vpop.f32.mrb[0].mxu0
        %928 = vdwg.mxu0
        %929 = vst [vmem:[%s148 + $0x80] sm:$0xff] %v867
        %930 = vst [vmem:[%s148 + $0x88] sm:$0xff] %v870
        %931 = vst [vmem:[%s148 + $0x90] sm:$0xff] %v875
        %932 = vst [vmem:[%s148 + $0x98] sm:$0xff] %v878
        %933 = vst [vmem:[%s148 + $0xa0] sm:$0xff] %v883
        %934 = vst [vmem:[%s148 + $0xa8] sm:$0xff] %v886
        %935 = vst [vmem:[%s148 + $0xb0] sm:$0xff] %v891
        %936 = vst [vmem:[%s148 + $0xb8] sm:$0xff] %v894
        %937 = vst [vmem:[%s148 + $0xc0] sm:$0xff] %v899
        %938 = vst [vmem:[%s148 + $0xc8] sm:$0xff] %v902
        %939 = vst [vmem:[%s148 + $0xd0] sm:$0xff] %v907
        %940 = vst [vmem:[%s148 + $0xd8] sm:$0xff] %v910
        %941 = vst [vmem:[%s148 + $0xe0] sm:$0xff] %v915
        %942 = vst [vmem:[%s148 + $0xe8] sm:$0xff] %v918
        %943 = vst [vmem:[%s148 + $0xf0] sm:$0xff] %v923
        %944 = vst [vmem:[%s148 + $0xf8] sm:$0xff] %v926
        %s945 = sadd.s32 %s185, 256
        %s946 = scalar_lea.vmem %s0, %s945
        %v947 = vld [vmem:[%s946] sm:$0xff]
        %v948 = vld [vmem:[%s946 + $0x8] sm:$0xff]
        %v949 = vld [vmem:[%s946 + $0x10] sm:$0xff]
        %v950 = vld [vmem:[%s946 + $0x18] sm:$0xff]
        %v951 = vld [vmem:[%s946 + $0x20] sm:$0xff]
        %v952 = vld [vmem:[%s946 + $0x28] sm:$0xff]
        %v953 = vld [vmem:[%s946 + $0x30] sm:$0xff]
        %v954 = vld [vmem:[%s946 + $0x38] sm:$0xff]
        %v955 = vld [vmem:[%s946 + $0x40] sm:$0xff]
        %v956 = vld [vmem:[%s946 + $0x48] sm:$0xff]
        %v957 = vld [vmem:[%s946 + $0x50] sm:$0xff]
        %v958 = vld [vmem:[%s946 + $0x58] sm:$0xff]
        %v959 = vld [vmem:[%s946 + $0x60] sm:$0xff]
        %v960 = vld [vmem:[%s946 + $0x68] sm:$0xff]
        %v961 = vld [vmem:[%s946 + $0x70] sm:$0xff]
        %v962 = vld [vmem:[%s946 + $0x78] sm:$0xff]
        %963 = vset.pattern.permute.xlu0 0
        %964 = vperm.xlu0 %963, %v947
        %v965 = vpop.permute.xlu0 %964
        %966 = vset.pattern.permute.xlu0 0
        %967 = vperm.xlu0 %966, %v948
        %v968 = vpop.permute.xlu0 %967
        %969 = vset.pattern.permute.xlu0 0
        %970 = vperm.xlu0 %969, %v949
        %v971 = vpop.permute.xlu0 %970
        %972 = vset.pattern.permute.xlu0 0
        %973 = vperm.xlu0 %972, %v950
        %v974 = vpop.permute.xlu0 %973
        %975 = vset.pattern.permute.xlu0 0
        %976 = vperm.xlu0 %975, %v951
        %v977 = vpop.permute.xlu0 %976
        %978 = vset.pattern.permute.xlu0 0
        %979 = vperm.xlu0 %978, %v952
        %v980 = vpop.permute.xlu0 %979
        %981 = vset.pattern.permute.xlu0 0
        %982 = vperm.xlu0 %981, %v953
        %v983 = vpop.permute.xlu0 %982
        %984 = vset.pattern.permute.xlu0 0
        %985 = vperm.xlu0 %984, %v954
        %v986 = vpop.permute.xlu0 %985
        %987 = vset.pattern.permute.xlu0 0
        %988 = vperm.xlu0 %987, %v955
        %v989 = vpop.permute.xlu0 %988
        %990 = vset.pattern.permute.xlu0 0
        %991 = vperm.xlu0 %990, %v956
        %v992 = vpop.permute.xlu0 %991
        %993 = vset.pattern.permute.xlu0 0
        %994 = vperm.xlu0 %993, %v957
        %v995 = vpop.permute.xlu0 %994
        %996 = vset.pattern.permute.xlu0 0
        %997 = vperm.xlu0 %996, %v958
        %v998 = vpop.permute.xlu0 %997
        %999 = vset.pattern.permute.xlu0 0
        %1000 = vperm.xlu0 %999, %v959
        %v1001 = vpop.permute.xlu0 %1000
        %1002 = vset.pattern.permute.xlu0 0
        %1003 = vperm.xlu0 %1002, %v960
        %v1004 = vpop.permute.xlu0 %1003
        %1005 = vset.pattern.permute.xlu0 0
        %1006 = vperm.xlu0 %1005, %v961
        %v1007 = vpop.permute.xlu0 %1006
        %1008 = vset.pattern.permute.xlu0 0
        %1009 = vperm.xlu0 %1008, %v962
        %v1010 = vpop.permute.xlu0 %1009
        %vm1011 = vcmp.eq.s32.totalorder %v152, %v965
        %vm1012 = vcmp.eq.s32.totalorder %v152, %v968
        %vm1013 = vcmp.eq.s32.totalorder %v152, %v971
        %vm1014 = vcmp.eq.s32.totalorder %v152, %v974
        %vm1015 = vcmp.eq.s32.totalorder %v152, %v977
        %vm1016 = vcmp.eq.s32.totalorder %v152, %v980
        %vm1017 = vcmp.eq.s32.totalorder %v152, %v983
        %vm1018 = vcmp.eq.s32.totalorder %v152, %v986
        %vm1019 = vcmp.eq.s32.totalorder %v152, %v989
        %vm1020 = vcmp.eq.s32.totalorder %v152, %v992
        %vm1021 = vcmp.eq.s32.totalorder %v152, %v995
        %vm1022 = vcmp.eq.s32.totalorder %v152, %v998
        %vm1023 = vcmp.eq.s32.totalorder %v152, %v1001
        %vm1024 = vcmp.eq.s32.totalorder %v152, %v1004
        %vm1025 = vcmp.eq.s32.totalorder %v152, %v1007
        %vm1026 = vcmp.eq.s32.totalorder %v152, %v1010
        %v1027 = vsel %vm1011, 1, 0
        %v1028 = vsel %vm1012, 1, 0
        %v1029 = vsel %vm1013, 1, 0
        %v1030 = vsel %vm1014, 1, 0
        %v1031 = vsel %vm1015, 1, 0
        %v1032 = vsel %vm1016, 1, 0
        %v1033 = vsel %vm1017, 1, 0
        %v1034 = vsel %vm1018, 1, 0
        %v1035 = vsel %vm1019, 1, 0
        %v1036 = vsel %vm1020, 1, 0
        %v1037 = vsel %vm1021, 1, 0
        %v1038 = vsel %vm1022, 1, 0
        %v1039 = vsel %vm1023, 1, 0
        %v1040 = vsel %vm1024, 1, 0
        %v1041 = vsel %vm1025, 1, 0
        %v1042 = vsel %vm1026, 1, 0
        %v1043 = vcvt.s32.f32 %v1027
        %v1044 = vcvt.s32.f32 %v1028
        %v1045 = vcvt.s32.f32 %v1029
        %v1046 = vcvt.s32.f32 %v1030
        %v1047 = vcvt.s32.f32 %v1031
        %v1048 = vcvt.s32.f32 %v1032
        %v1049 = vcvt.s32.f32 %v1033
        %v1050 = vcvt.s32.f32 %v1034
        %v1051 = vcvt.s32.f32 %v1035
        %v1052 = vcvt.s32.f32 %v1036
        %v1053 = vcvt.s32.f32 %v1037
        %v1054 = vcvt.s32.f32 %v1038
        %v1055 = vcvt.s32.f32 %v1039
        %v1056 = vcvt.s32.f32 %v1040
        %v1057 = vcvt.s32.f32 %v1041
        %v1058 = vcvt.s32.f32 %v1042
        %v1059 = vpack.c.bf16 %v1044, %v1043
        %v1060 = vpack.c.bf16 %v1046, %v1045
        %v1061 = vpack.c.bf16 %v1048, %v1047
        %v1062 = vpack.c.bf16 %v1050, %v1049
        %v1063 = vpack.c.bf16 %v1052, %v1051
        %v1064 = vpack.c.bf16 %v1054, %v1053
        %v1065 = vpack.c.bf16 %v1056, %v1055
        %v1066 = vpack.c.bf16 %v1058, %v1057
        %1067 = vmatprep.subr.bf16.mxu0 0
        %1068 = vmatpush1.bf16.msra.mxu0 %v339
        %1069 = vmatprep.subr.bf16.mxu0 0
        %1070 = vmatpush1.bf16.msra.mxu0 %v340
        %1071 = vmatprep.subr.bf16.mxu0 0
        %1072 = vmatpush1.bf16.msra.mxu0 %v341
        %1073 = vmatprep.subr.bf16.mxu0 0
        %1074 = vmatpush1.bf16.msra.mxu0 %v342
        %1075 = vmatprep.subr.bf16.mxu0 0
        %1076 = vmatpush1.bf16.msra.mxu0 %v343
        %1077 = vmatprep.subr.bf16.mxu0 0
        %1078 = vmatpush1.bf16.msra.mxu0 %v344
        %1079 = vmatprep.subr.bf16.mxu0 0
        %1080 = vmatpush1.bf16.msra.mxu0 %v345
        %1081 = vmatprep.subr.bf16.mxu0 0
        %1082 = vmatpush1.bf16.msra.mxu0 %v346
        %1083 = vmatprep.subr.bf16.mxu0 0
        %1084 = vmatpush1.bf16.msra.mxu0 0
        %1085 = vmatprep.subr.bf16.mxu0 0
        %1086 = vmatpush1.bf16.msra.mxu0 0
        %1087 = vmatprep.subr.bf16.mxu0 0
        %1088 = vmatpush1.bf16.msra.mxu0 0
        %1089 = vmatprep.subr.bf16.mxu0 0
        %1090 = vmatpush1.bf16.msra.mxu0 0
        %1091 = vmatprep.subr.bf16.mxu0 0
        %1092 = vmatpush1.bf16.msra.mxu0 0
        %1093 = vmatprep.subr.bf16.mxu0 0
        %1094 = vmatpush1.bf16.msra.mxu0 0
        %1095 = vmatprep.subr.bf16.mxu0 0
        %1096 = vmatpush1.bf16.msra.mxu0 0
        %1097 = vmatprep.subr.bf16.mxu0 0
        %1098 = vmatpush1.bf16.msra.mxu0 0
        %1099 = vmatprep.mubr.bf16.mxu0 0
        %1100 = vmatmul.mubr.bf16.gmra.mrb[0].mxu0 %v1059
        %v1101 = vpop.f32.mrb[0].mxu0
        %v1102 = vadd.f32 0.0, %v1101
        %v1103 = vpop.f32.mrb[0].mxu0
        %v1104 = vpop.f32.mrb[0].mxu0
        %v1105 = vadd.f32 0.0, %v1104
        %v1106 = vpop.f32.mrb[0].mxu0
        %1107 = vmatprep.mubr.bf16.mxu0 0
        %1108 = vmatmul.mubr.bf16.gmra.mrb[0].mxu0 %v1060
        %v1109 = vpop.f32.mrb[0].mxu0
        %v1110 = vadd.f32 0.0, %v1109
        %v1111 = vpop.f32.mrb[0].mxu0
        %v1112 = vpop.f32.mrb[0].mxu0
        %v1113 = vadd.f32 0.0, %v1112
        %v1114 = vpop.f32.mrb[0].mxu0
        %1115 = vmatprep.mubr.bf16.mxu0 0
        %1116 = vmatmul.mubr.bf16.gmra.mrb[0].mxu0 %v1061
        %v1117 = vpop.f32.mrb[0].mxu0
        %v1118 = vadd.f32 0.0, %v1117
        %v1119 = vpop.f32.mrb[0].mxu0
        %v1120 = vpop.f32.mrb[0].mxu0
        %v1121 = vadd.f32 0.0, %v1120
        %v1122 = vpop.f32.mrb[0].mxu0
        %1123 = vmatprep.mubr.bf16.mxu0 0
        %1124 = vmatmul.mubr.bf16.gmra.mrb[0].mxu0 %v1062
        %v1125 = vpop.f32.mrb[0].mxu0
        %v1126 = vadd.f32 0.0, %v1125
        %v1127 = vpop.f32.mrb[0].mxu0
        %v1128 = vpop.f32.mrb[0].mxu0
        %v1129 = vadd.f32 0.0, %v1128
        %v1130 = vpop.f32.mrb[0].mxu0
        %1131 = vmatprep.mubr.bf16.mxu0 0
        %1132 = vmatmul.mubr.bf16.gmra.mrb[0].mxu0 %v1063
        %v1133 = vpop.f32.mrb[0].mxu0
        %v1134 = vadd.f32 0.0, %v1133
        %v1135 = vpop.f32.mrb[0].mxu0
        %v1136 = vpop.f32.mrb[0].mxu0
        %v1137 = vadd.f32 0.0, %v1136
        %v1138 = vpop.f32.mrb[0].mxu0
        %1139 = vmatprep.mubr.bf16.mxu0 0
        %1140 = vmatmul.mubr.bf16.gmra.mrb[0].mxu0 %v1064
        %v1141 = vpop.f32.mrb[0].mxu0
        %v1142 = vadd.f32 0.0, %v1141
        %v1143 = vpop.f32.mrb[0].mxu0
        %v1144 = vpop.f32.mrb[0].mxu0
        %v1145 = vadd.f32 0.0, %v1144
        %v1146 = vpop.f32.mrb[0].mxu0
        %1147 = vmatprep.mubr.bf16.mxu0 0
        %1148 = vmatmul.mubr.bf16.gmra.mrb[0].mxu0 %v1065
        %v1149 = vpop.f32.mrb[0].mxu0
        %v1150 = vadd.f32 0.0, %v1149
        %v1151 = vpop.f32.mrb[0].mxu0
        %v1152 = vpop.f32.mrb[0].mxu0
        %v1153 = vadd.f32 0.0, %v1152
        %v1154 = vpop.f32.mrb[0].mxu0
        %1155 = vmatprep.mubr.bf16.mxu0 0
        %1156 = vmatmul.mubr.bf16.gmra.mrb[0].mxu0 %v1066
        %v1157 = vpop.f32.mrb[0].mxu0
        %v1158 = vadd.f32 0.0, %v1157
        %v1159 = vpop.f32.mrb[0].mxu0
        %v1160 = vpop.f32.mrb[0].mxu0
        %v1161 = vadd.f32 0.0, %v1160
        %v1162 = vpop.f32.mrb[0].mxu0
        %1163 = vdwg.mxu0
        %1164 = vmatprep.subr.bf16.mxu0 0
        %1165 = vmatpush1.bf16.msra.mxu0 %v484
        %1166 = vmatprep.subr.bf16.mxu0 0
        %1167 = vmatpush1.bf16.msra.mxu0 %v485
        %1168 = vmatprep.subr.bf16.mxu0 0
        %1169 = vmatpush1.bf16.msra.mxu0 %v486
        %1170 = vmatprep.subr.bf16.mxu0 0
        %1171 = vmatpush1.bf16.msra.mxu0 %v487
        %1172 = vmatprep.subr.bf16.mxu0 0
        %1173 = vmatpush1.bf16.msra.mxu0 %v488
        %1174 = vmatprep.subr.bf16.mxu0 0
        %1175 = vmatpush1.bf16.msra.mxu0 %v489
        %1176 = vmatprep.subr.bf16.mxu0 0
        %1177 = vmatpush1.bf16.msra.mxu0 %v490
        %1178 = vmatprep.subr.bf16.mxu0 0
        %1179 = vmatpush1.bf16.msra.mxu0 %v491
        %1180 = vmatprep.subr.bf16.mxu0 0
        %1181 = vmatpush1.bf16.msra.mxu0 0
        %1182 = vmatprep.subr.bf16.mxu0 0
        %1183 = vmatpush1.bf16.msra.mxu0 0
        %1184 = vmatprep.subr.bf16.mxu0 0
        %1185 = vmatpush1.bf16.msra.mxu0 0
        %1186 = vmatprep.subr.bf16.mxu0 0
        %1187 = vmatpush1.bf16.msra.mxu0 0
        %1188 = vmatprep.subr.bf16.mxu0 0
        %1189 = vmatpush1.bf16.msra.mxu0 0
        %1190 = vmatprep.subr.bf16.mxu0 0
        %1191 = vmatpush1.bf16.msra.mxu0 0
        %1192 = vmatprep.subr.bf16.mxu0 0
        %1193 = vmatpush1.bf16.msra.mxu0 0
        %1194 = vmatprep.subr.bf16.mxu0 0
        %1195 = vmatpush1.bf16.msra.mxu0 0
        %1196 = vmatprep.mubr.bf16.mxu0 0
        %1197 = vmatmul.mubr.bf16.gmra.mrb[0].mxu0 %v1059
        %v1198 = vpop.f32.mrb[0].mxu0
        %v1199 = vadd.f32 %v1102, %v1198
        %v1200 = vpop.f32.mrb[0].mxu0
        %v1201 = vpop.f32.mrb[0].mxu0
        %v1202 = vadd.f32 %v1105, %v1201
        %v1203 = vpop.f32.mrb[0].mxu0
        %1204 = vmatprep.mubr.bf16.mxu0 0
        %1205 = vmatmul.mubr.bf16.gmra.mrb[0].mxu0 %v1060
        %v1206 = vpop.f32.mrb[0].mxu0
        %v1207 = vadd.f32 %v1110, %v1206
        %v1208 = vpop.f32.mrb[0].mxu0
        %v1209 = vpop.f32.mrb[0].mxu0
        %v1210 = vadd.f32 %v1113, %v1209
        %v1211 = vpop.f32.mrb[0].mxu0
        %1212 = vmatprep.mubr.bf16.mxu0 0
        %1213 = vmatmul.mubr.bf16.gmra.mrb[0].mxu0 %v1061
        %v1214 = vpop.f32.mrb[0].mxu0
        %v1215 = vadd.f32 %v1118, %v1214
        %v1216 = vpop.f32.mrb[0].mxu0
        %v1217 = vpop.f32.mrb[0].mxu0
        %v1218 = vadd.f32 %v1121, %v1217
        %v1219 = vpop.f32.mrb[0].mxu0
        %1220 = vmatprep.mubr.bf16.mxu0 0
        %1221 = vmatmul.mubr.bf16.gmra.mrb[0].mxu0 %v1062
        %v1222 = vpop.f32.mrb[0].mxu0
        %v1223 = vadd.f32 %v1126, %v1222
        %v1224 = vpop.f32.mrb[0].mxu0
        %v1225 = vpop.f32.mrb[0].mxu0
        %v1226 = vadd.f32 %v1129, %v1225
        %v1227 = vpop.f32.mrb[0].mxu0
        %1228 = vmatprep.mubr.bf16.mxu0 0
        %1229 = vmatmul.mubr.bf16.gmra.mrb[0].mxu0 %v1063
        %v1230 = vpop.f32.mrb[0].mxu0
        %v1231 = vadd.f32 %v1134, %v1230
        %v1232 = vpop.f32.mrb[0].mxu0
        %v1233 = vpop.f32.mrb[0].mxu0
        %v1234 = vadd.f32 %v1137, %v1233
        %v1235 = vpop.f32.mrb[0].mxu0
        %1236 = vmatprep.mubr.bf16.mxu0 0
        %1237 = vmatmul.mubr.bf16.gmra.mrb[0].mxu0 %v1064
        %v1238 = vpop.f32.mrb[0].mxu0
        %v1239 = vadd.f32 %v1142, %v1238
        %v1240 = vpop.f32.mrb[0].mxu0
        %v1241 = vpop.f32.mrb[0].mxu0
        %v1242 = vadd.f32 %v1145, %v1241
        %v1243 = vpop.f32.mrb[0].mxu0
        %1244 = vmatprep.mubr.bf16.mxu0 0
        %1245 = vmatmul.mubr.bf16.gmra.mrb[0].mxu0 %v1065
        %v1246 = vpop.f32.mrb[0].mxu0
        %v1247 = vadd.f32 %v1150, %v1246
        %v1248 = vpop.f32.mrb[0].mxu0
        %v1249 = vpop.f32.mrb[0].mxu0
        %v1250 = vadd.f32 %v1153, %v1249
        %v1251 = vpop.f32.mrb[0].mxu0
        %1252 = vmatprep.mubr.bf16.mxu0 0
        %1253 = vmatmul.mubr.bf16.gmra.mrb[0].mxu0 %v1066
        %v1254 = vpop.f32.mrb[0].mxu0
        %v1255 = vadd.f32 %v1158, %v1254
        %v1256 = vpop.f32.mrb[0].mxu0
        %v1257 = vpop.f32.mrb[0].mxu0
        %v1258 = vadd.f32 %v1161, %v1257
        %v1259 = vpop.f32.mrb[0].mxu0
        %1260 = vdwg.mxu0
        %1261 = vst [vmem:[%s148 + $0x100] sm:$0xff] %v1199
        %1262 = vst [vmem:[%s148 + $0x108] sm:$0xff] %v1202
        %1263 = vst [vmem:[%s148 + $0x110] sm:$0xff] %v1207
        %1264 = vst [vmem:[%s148 + $0x118] sm:$0xff] %v1210
        %1265 = vst [vmem:[%s148 + $0x120] sm:$0xff] %v1215
        %1266 = vst [vmem:[%s148 + $0x128] sm:$0xff] %v1218
        %1267 = vst [vmem:[%s148 + $0x130] sm:$0xff] %v1223
        %1268 = vst [vmem:[%s148 + $0x138] sm:$0xff] %v1226
        %1269 = vst [vmem:[%s148 + $0x140] sm:$0xff] %v1231
        %1270 = vst [vmem:[%s148 + $0x148] sm:$0xff] %v1234
        %1271 = vst [vmem:[%s148 + $0x150] sm:$0xff] %v1239
        %1272 = vst [vmem:[%s148 + $0x158] sm:$0xff] %v1242
        %1273 = vst [vmem:[%s148 + $0x160] sm:$0xff] %v1247
        %1274 = vst [vmem:[%s148 + $0x168] sm:$0xff] %v1250
        %1275 = vst [vmem:[%s148 + $0x170] sm:$0xff] %v1255
        %1276 = vst [vmem:[%s148 + $0x178] sm:$0xff] %v1258
        %s1277 = sadd.s32 %s185, 384
        %s1278 = scalar_lea.vmem %s0, %s1277
        %v1279 = vld [vmem:[%s1278] sm:$0xff]
        %v1280 = vld [vmem:[%s1278 + $0x8] sm:$0xff]
        %v1281 = vld [vmem:[%s1278 + $0x10] sm:$0xff]
        %v1282 = vld [vmem:[%s1278 + $0x18] sm:$0xff]
        %v1283 = vld [vmem:[%s1278 + $0x20] sm:$0xff]
        %v1284 = vld [vmem:[%s1278 + $0x28] sm:$0xff]
        %v1285 = vld [vmem:[%s1278 + $0x30] sm:$0xff]
        %v1286 = vld [vmem:[%s1278 + $0x38] sm:$0xff]
        %v1287 = vld [vmem:[%s1278 + $0x40] sm:$0xff]
        %v1288 = vld [vmem:[%s1278 + $0x48] sm:$0xff]
        %v1289 = vld [vmem:[%s1278 + $0x50] sm:$0xff]
        %v1290 = vld [vmem:[%s1278 + $0x58] sm:$0xff]
        %v1291 = vld [vmem:[%s1278 + $0x60] sm:$0xff]
        %v1292 = vld [vmem:[%s1278 + $0x68] sm:$0xff]
        %v1293 = vld [vmem:[%s1278 + $0x70] sm:$0xff]
        %v1294 = vld [vmem:[%s1278 + $0x78] sm:$0xff]
        %1295 = vset.pattern.permute.xlu0 0
        %1296 = vperm.xlu0 %1295, %v1279
        %v1297 = vpop.permute.xlu0 %1296
        %1298 = vset.pattern.permute.xlu0 0
        %1299 = vperm.xlu0 %1298, %v1280
        %v1300 = vpop.permute.xlu0 %1299
        %1301 = vset.pattern.permute.xlu0 0
        %1302 = vperm.xlu0 %1301, %v1281
        %v1303 = vpop.permute.xlu0 %1302
        %1304 = vset.pattern.permute.xlu0 0
        %1305 = vperm.xlu0 %1304, %v1282
        %v1306 = vpop.permute.xlu0 %1305
        %1307 = vset.pattern.permute.xlu0 0
        %1308 = vperm.xlu0 %1307, %v1283
        %v1309 = vpop.permute.xlu0 %1308
        %1310 = vset.pattern.permute.xlu0 0
        %1311 = vperm.xlu0 %1310, %v1284
        %v1312 = vpop.permute.xlu0 %1311
        %1313 = vset.pattern.permute.xlu0 0
        %1314 = vperm.xlu0 %1313, %v1285
        %v1315 = vpop.permute.xlu0 %1314
        %1316 = vset.pattern.permute.xlu0 0
        %1317 = vperm.xlu0 %1316, %v1286
        %v1318 = vpop.permute.xlu0 %1317
        %1319 = vset.pattern.permute.xlu0 0
        %1320 = vperm.xlu0 %1319, %v1287
        %v1321 = vpop.permute.xlu0 %1320
        %1322 = vset.pattern.permute.xlu0 0
        %1323 = vperm.xlu0 %1322, %v1288
        %v1324 = vpop.permute.xlu0 %1323
        %1325 = vset.pattern.permute.xlu0 0
        %1326 = vperm.xlu0 %1325, %v1289
        %v1327 = vpop.permute.xlu0 %1326
        %1328 = vset.pattern.permute.xlu0 0
        %1329 = vperm.xlu0 %1328, %v1290
        %v1330 = vpop.permute.xlu0 %1329
        %1331 = vset.pattern.permute.xlu0 0
        %1332 = vperm.xlu0 %1331, %v1291
        %v1333 = vpop.permute.xlu0 %1332
        %1334 = vset.pattern.permute.xlu0 0
        %1335 = vperm.xlu0 %1334, %v1292
        %v1336 = vpop.permute.xlu0 %1335
        %1337 = vset.pattern.permute.xlu0 0
        %1338 = vperm.xlu0 %1337, %v1293
        %v1339 = vpop.permute.xlu0 %1338
        %1340 = vset.pattern.permute.xlu0 0
        %1341 = vperm.xlu0 %1340, %v1294
        %v1342 = vpop.permute.xlu0 %1341
        %vm1343 = vcmp.eq.s32.totalorder %v152, %v1297
        %vm1344 = vcmp.eq.s32.totalorder %v152, %v1300
        %vm1345 = vcmp.eq.s32.totalorder %v152, %v1303
        %vm1346 = vcmp.eq.s32.totalorder %v152, %v1306
        %vm1347 = vcmp.eq.s32.totalorder %v152, %v1309
        %vm1348 = vcmp.eq.s32.totalorder %v152, %v1312
        %vm1349 = vcmp.eq.s32.totalorder %v152, %v1315
        %vm1350 = vcmp.eq.s32.totalorder %v152, %v1318
        %vm1351 = vcmp.eq.s32.totalorder %v152, %v1321
        %vm1352 = vcmp.eq.s32.totalorder %v152, %v1324
        %vm1353 = vcmp.eq.s32.totalorder %v152, %v1327
        %vm1354 = vcmp.eq.s32.totalorder %v152, %v1330
        %vm1355 = vcmp.eq.s32.totalorder %v152, %v1333
        %vm1356 = vcmp.eq.s32.totalorder %v152, %v1336
        %vm1357 = vcmp.eq.s32.totalorder %v152, %v1339
        %vm1358 = vcmp.eq.s32.totalorder %v152, %v1342
        %v1359 = vsel %vm1343, 1, 0
        %v1360 = vsel %vm1344, 1, 0
        %v1361 = vsel %vm1345, 1, 0
        %v1362 = vsel %vm1346, 1, 0
        %v1363 = vsel %vm1347, 1, 0
        %v1364 = vsel %vm1348, 1, 0
        %v1365 = vsel %vm1349, 1, 0
        %v1366 = vsel %vm1350, 1, 0
        %v1367 = vsel %vm1351, 1, 0
        %v1368 = vsel %vm1352, 1, 0
        %v1369 = vsel %vm1353, 1, 0
        %v1370 = vsel %vm1354, 1, 0
        %v1371 = vsel %vm1355, 1, 0
        %v1372 = vsel %vm1356, 1, 0
        %v1373 = vsel %vm1357, 1, 0
        %v1374 = vsel %vm1358, 1, 0
        %v1375 = vcvt.s32.f32 %v1359
        %v1376 = vcvt.s32.f32 %v1360
        %v1377 = vcvt.s32.f32 %v1361
        %v1378 = vcvt.s32.f32 %v1362
        %v1379 = vcvt.s32.f32 %v1363
        %v1380 = vcvt.s32.f32 %v1364
        %v1381 = vcvt.s32.f32 %v1365
        %v1382 = vcvt.s32.f32 %v1366
        %v1383 = vcvt.s32.f32 %v1367
        %v1384 = vcvt.s32.f32 %v1368
        %v1385 = vcvt.s32.f32 %v1369
        %v1386 = vcvt.s32.f32 %v1370
        %v1387 = vcvt.s32.f32 %v1371
        %v1388 = vcvt.s32.f32 %v1372
        %v1389 = vcvt.s32.f32 %v1373
        %v1390 = vcvt.s32.f32 %v1374
        %v1391 = vpack.c.bf16 %v1376, %v1375
        %v1392 = vpack.c.bf16 %v1378, %v1377
        %v1393 = vpack.c.bf16 %v1380, %v1379
        %v1394 = vpack.c.bf16 %v1382, %v1381
        %v1395 = vpack.c.bf16 %v1384, %v1383
        %v1396 = vpack.c.bf16 %v1386, %v1385
        %v1397 = vpack.c.bf16 %v1388, %v1387
        %v1398 = vpack.c.bf16 %v1390, %v1389
        %1399 = vmatprep.subr.bf16.mxu0 0
        %1400 = vmatpush1.bf16.msra.mxu0 %v339
        %1401 = vmatprep.subr.bf16.mxu0 0
        %1402 = vmatpush1.bf16.msra.mxu0 %v340
        %1403 = vmatprep.subr.bf16.mxu0 0
        %1404 = vmatpush1.bf16.msra.mxu0 %v341
        %1405 = vmatprep.subr.bf16.mxu0 0
        %1406 = vmatpush1.bf16.msra.mxu0 %v342
        %1407 = vmatprep.subr.bf16.mxu0 0
        %1408 = vmatpush1.bf16.msra.mxu0 %v343
        %1409 = vmatprep.subr.bf16.mxu0 0
        %1410 = vmatpush1.bf16.msra.mxu0 %v344
        %1411 = vmatprep.subr.bf16.mxu0 0
        %1412 = vmatpush1.bf16.msra.mxu0 %v345
        %1413 = vmatprep.subr.bf16.mxu0 0
        %1414 = vmatpush1.bf16.msra.mxu0 %v346
        %1415 = vmatprep.subr.bf16.mxu0 0
        %1416 = vmatpush1.bf16.msra.mxu0 0
        %1417 = vmatprep.subr.bf16.mxu0 0
        %1418 = vmatpush1.bf16.msra.mxu0 0
        %1419 = vmatprep.subr.bf16.mxu0 0
        %1420 = vmatpush1.bf16.msra.mxu0 0
        %1421 = vmatprep.subr.bf16.mxu0 0
        %1422 = vmatpush1.bf16.msra.mxu0 0
        %1423 = vmatprep.subr.bf16.mxu0 0
        %1424 = vmatpush1.bf16.msra.mxu0 0
        %1425 = vmatprep.subr.bf16.mxu0 0
        %1426 = vmatpush1.bf16.msra.mxu0 0
        %1427 = vmatprep.subr.bf16.mxu0 0
        %1428 = vmatpush1.bf16.msra.mxu0 0
        %1429 = vmatprep.subr.bf16.mxu0 0
        %1430 = vmatpush1.bf16.msra.mxu0 0
        %1431 = vmatprep.mubr.bf16.mxu0 0
        %1432 = vmatmul.mubr.bf16.gmra.mrb[0].mxu0 %v1391
        %v1433 = vpop.f32.mrb[0].mxu0
        %v1434 = vadd.f32 0.0, %v1433
        %v1435 = vpop.f32.mrb[0].mxu0
        %v1436 = vpop.f32.mrb[0].mxu0
        %v1437 = vadd.f32 0.0, %v1436
        %v1438 = vpop.f32.mrb[0].mxu0
        %1439 = vmatprep.mubr.bf16.mxu0 0
        %1440 = vmatmul.mubr.bf16.gmra.mrb[0].mxu0 %v1392
        %v1441 = vpop.f32.mrb[0].mxu0
        %v1442 = vadd.f32 0.0, %v1441
        %v1443 = vpop.f32.mrb[0].mxu0
        %v1444 = vpop.f32.mrb[0].mxu0
        %v1445 = vadd.f32 0.0, %v1444
        %v1446 = vpop.f32.mrb[0].mxu0
        %1447 = vmatprep.mubr.bf16.mxu0 0
        %1448 = vmatmul.mubr.bf16.gmra.mrb[0].mxu0 %v1393
        %v1449 = vpop.f32.mrb[0].mxu0
        %v1450 = vadd.f32 0.0, %v1449
        %v1451 = vpop.f32.mrb[0].mxu0
        %v1452 = vpop.f32.mrb[0].mxu0
        %v1453 = vadd.f32 0.0, %v1452
        %v1454 = vpop.f32.mrb[0].mxu0
        %1455 = vmatprep.mubr.bf16.mxu0 0
        %1456 = vmatmul.mubr.bf16.gmra.mrb[0].mxu0 %v1394
        %v1457 = vpop.f32.mrb[0].mxu0
        %v1458 = vadd.f32 0.0, %v1457
        %v1459 = vpop.f32.mrb[0].mxu0
        %v1460 = vpop.f32.mrb[0].mxu0
        %v1461 = vadd.f32 0.0, %v1460
        %v1462 = vpop.f32.mrb[0].mxu0
        %1463 = vmatprep.mubr.bf16.mxu0 0
        %1464 = vmatmul.mubr.bf16.gmra.mrb[0].mxu0 %v1395
        %v1465 = vpop.f32.mrb[0].mxu0
        %v1466 = vadd.f32 0.0, %v1465
        %v1467 = vpop.f32.mrb[0].mxu0
        %v1468 = vpop.f32.mrb[0].mxu0
        %v1469 = vadd.f32 0.0, %v1468
        %v1470 = vpop.f32.mrb[0].mxu0
        %1471 = vmatprep.mubr.bf16.mxu0 0
        %1472 = vmatmul.mubr.bf16.gmra.mrb[0].mxu0 %v1396
        %v1473 = vpop.f32.mrb[0].mxu0
        %v1474 = vadd.f32 0.0, %v1473
        %v1475 = vpop.f32.mrb[0].mxu0
        %v1476 = vpop.f32.mrb[0].mxu0
        %v1477 = vadd.f32 0.0, %v1476
        %v1478 = vpop.f32.mrb[0].mxu0
        %1479 = vmatprep.mubr.bf16.mxu0 0
        %1480 = vmatmul.mubr.bf16.gmra.mrb[0].mxu0 %v1397
        %v1481 = vpop.f32.mrb[0].mxu0
        %v1482 = vadd.f32 0.0, %v1481
        %v1483 = vpop.f32.mrb[0].mxu0
        %v1484 = vpop.f32.mrb[0].mxu0
        %v1485 = vadd.f32 0.0, %v1484
        %v1486 = vpop.f32.mrb[0].mxu0
        %1487 = vmatprep.mubr.bf16.mxu0 0
        %1488 = vmatmul.mubr.bf16.gmra.mrb[0].mxu0 %v1398
        %v1489 = vpop.f32.mrb[0].mxu0
        %v1490 = vadd.f32 0.0, %v1489
        %v1491 = vpop.f32.mrb[0].mxu0
        %v1492 = vpop.f32.mrb[0].mxu0
        %v1493 = vadd.f32 0.0, %v1492
        %v1494 = vpop.f32.mrb[0].mxu0
        %1495 = vdwg.mxu0
        %1496 = vmatprep.subr.bf16.mxu0 0
        %1497 = vmatpush1.bf16.msra.mxu0 %v484
        %1498 = vmatprep.subr.bf16.mxu0 0
        %1499 = vmatpush1.bf16.msra.mxu0 %v485
        %1500 = vmatprep.subr.bf16.mxu0 0
        %1501 = vmatpush1.bf16.msra.mxu0 %v486
        %1502 = vmatprep.subr.bf16.mxu0 0
        %1503 = vmatpush1.bf16.msra.mxu0 %v487
        %1504 = vmatprep.subr.bf16.mxu0 0
        %1505 = vmatpush1.bf16.msra.mxu0 %v488
        %1506 = vmatprep.subr.bf16.mxu0 0
        %1507 = vmatpush1.bf16.msra.mxu0 %v489
        %1508 = vmatprep.subr.bf16.mxu0 0
        %1509 = vmatpush1.bf16.msra.mxu0 %v490
        %1510 = vmatprep.subr.bf16.mxu0 0
        %1511 = vmatpush1.bf16.msra.mxu0 %v491
        %1512 = vmatprep.subr.bf16.mxu0 0
        %1513 = vmatpush1.bf16.msra.mxu0 0
        %1514 = vmatprep.subr.bf16.mxu0 0
        %1515 = vmatpush1.bf16.msra.mxu0 0
        %1516 = vmatprep.subr.bf16.mxu0 0
        %1517 = vmatpush1.bf16.msra.mxu0 0
        %1518 = vmatprep.subr.bf16.mxu0 0
        %1519 = vmatpush1.bf16.msra.mxu0 0
        %1520 = vmatprep.subr.bf16.mxu0 0
        %1521 = vmatpush1.bf16.msra.mxu0 0
        %1522 = vmatprep.subr.bf16.mxu0 0
        %1523 = vmatpush1.bf16.msra.mxu0 0
        %1524 = vmatprep.subr.bf16.mxu0 0
        %1525 = vmatpush1.bf16.msra.mxu0 0
        %1526 = vmatprep.subr.bf16.mxu0 0
        %1527 = vmatpush1.bf16.msra.mxu0 0
        %1528 = vmatprep.mubr.bf16.mxu0 0
        %1529 = vmatmul.mubr.bf16.gmra.mrb[0].mxu0 %v1391
        %v1530 = vpop.f32.mrb[0].mxu0
        %v1531 = vadd.f32 %v1434, %v1530
        %v1532 = vpop.f32.mrb[0].mxu0
        %v1533 = vpop.f32.mrb[0].mxu0
        %v1534 = vadd.f32 %v1437, %v1533
        %v1535 = vpop.f32.mrb[0].mxu0
        %1536 = vmatprep.mubr.bf16.mxu0 0
        %1537 = vmatmul.mubr.bf16.gmra.mrb[0].mxu0 %v1392
        %v1538 = vpop.f32.mrb[0].mxu0
        %v1539 = vadd.f32 %v1442, %v1538
        %v1540 = vpop.f32.mrb[0].mxu0
        %v1541 = vpop.f32.mrb[0].mxu0
        %v1542 = vadd.f32 %v1445, %v1541
        %v1543 = vpop.f32.mrb[0].mxu0
        %1544 = vmatprep.mubr.bf16.mxu0 0
        %1545 = vmatmul.mubr.bf16.gmra.mrb[0].mxu0 %v1393
        %v1546 = vpop.f32.mrb[0].mxu0
        %v1547 = vadd.f32 %v1450, %v1546
        %v1548 = vpop.f32.mrb[0].mxu0
        %v1549 = vpop.f32.mrb[0].mxu0
        %v1550 = vadd.f32 %v1453, %v1549
        %v1551 = vpop.f32.mrb[0].mxu0
        %1552 = vmatprep.mubr.bf16.mxu0 0
        %1553 = vmatmul.mubr.bf16.gmra.mrb[0].mxu0 %v1394
        %v1554 = vpop.f32.mrb[0].mxu0
        %v1555 = vadd.f32 %v1458, %v1554
        %v1556 = vpop.f32.mrb[0].mxu0
        %v1557 = vpop.f32.mrb[0].mxu0
        %v1558 = vadd.f32 %v1461, %v1557
        %v1559 = vpop.f32.mrb[0].mxu0
        %1560 = vmatprep.mubr.bf16.mxu0 0
        %1561 = vmatmul.mubr.bf16.gmra.mrb[0].mxu0 %v1395
        %v1562 = vpop.f32.mrb[0].mxu0
        %v1563 = vadd.f32 %v1466, %v1562
        %v1564 = vpop.f32.mrb[0].mxu0
        %v1565 = vpop.f32.mrb[0].mxu0
        %v1566 = vadd.f32 %v1469, %v1565
        %v1567 = vpop.f32.mrb[0].mxu0
        %1568 = vmatprep.mubr.bf16.mxu0 0
        %1569 = vmatmul.mubr.bf16.gmra.mrb[0].mxu0 %v1396
        %v1570 = vpop.f32.mrb[0].mxu0
        %v1571 = vadd.f32 %v1474, %v1570
        %v1572 = vpop.f32.mrb[0].mxu0
        %v1573 = vpop.f32.mrb[0].mxu0
        %v1574 = vadd.f32 %v1477, %v1573
        %v1575 = vpop.f32.mrb[0].mxu0
        %1576 = vmatprep.mubr.bf16.mxu0 0
        %1577 = vmatmul.mubr.bf16.gmra.mrb[0].mxu0 %v1397
        %v1578 = vpop.f32.mrb[0].mxu0
        %v1579 = vadd.f32 %v1482, %v1578
        %v1580 = vpop.f32.mrb[0].mxu0
        %v1581 = vpop.f32.mrb[0].mxu0
        %v1582 = vadd.f32 %v1485, %v1581
        %v1583 = vpop.f32.mrb[0].mxu0
        %1584 = vmatprep.mubr.bf16.mxu0 0
        %1585 = vmatmul.mubr.bf16.gmra.mrb[0].mxu0 %v1398
        %v1586 = vpop.f32.mrb[0].mxu0
        %v1587 = vadd.f32 %v1490, %v1586
        %v1588 = vpop.f32.mrb[0].mxu0
        %v1589 = vpop.f32.mrb[0].mxu0
        %v1590 = vadd.f32 %v1493, %v1589
        %v1591 = vpop.f32.mrb[0].mxu0
        %1592 = vdwg.mxu0
        %1593 = vst [vmem:[%s148 + $0x180] sm:$0xff] %v1531
        %1594 = vst [vmem:[%s148 + $0x188] sm:$0xff] %v1534
        %1595 = vst [vmem:[%s148 + $0x190] sm:$0xff] %v1539
        %1596 = vst [vmem:[%s148 + $0x198] sm:$0xff] %v1542
        %1597 = vst [vmem:[%s148 + $0x1a0] sm:$0xff] %v1547
        %1598 = vst [vmem:[%s148 + $0x1a8] sm:$0xff] %v1550
        %1599 = vst [vmem:[%s148 + $0x1b0] sm:$0xff] %v1555
        %1600 = vst [vmem:[%s148 + $0x1b8] sm:$0xff] %v1558
        %1601 = vst [vmem:[%s148 + $0x1c0] sm:$0xff] %v1563
        %1602 = vst [vmem:[%s148 + $0x1c8] sm:$0xff] %v1566
        %1603 = vst [vmem:[%s148 + $0x1d0] sm:$0xff] %v1571
        %1604 = vst [vmem:[%s148 + $0x1d8] sm:$0xff] %v1574
        %1605 = vst [vmem:[%s148 + $0x1e0] sm:$0xff] %v1579
        %1606 = vst [vmem:[%s148 + $0x1e8] sm:$0xff] %v1582
        %1607 = vst [vmem:[%s148 + $0x1f0] sm:$0xff] %v1587
        %1608 = vst [vmem:[%s148 + $0x1f8] sm:$0xff] %v1590
        %s1609 = sand.u32 %s88, 1
        %s1610 = scalar_lea.sflag [#allocation3], %s1609
        %s1611 = sand.u32 %s88, 1
        %s1612 = smul.addr %s1611, 512
        %s1613 = scalar_lea.vmem [#allocation2], %s1612
        // Predicated region
        $region33: #{tpu_custom_call.1} parent=31 // pred_check
          %p1614 = pneg %p98
        $region34: #{tpu_custom_call.1} parent=31 // pred_check_branch
          %1616 = sbr.rel (%p1614) target = $region36
        $region35: #{tpu_custom_call.1} parent=31 // pred_region
          %s1617 = smul.u32 64, %s17
          %s1619 = ssub.s32 8192, 8192
          %1620 = vsyncadd %s1610, %s1619
          %s1621 = smul.addr %s1617, 128
          %s1622 = scalar_lea.hbm %s3, %s1621
          %s1623 = sshll.u32 %s1613, 4
          %s1624 = int_to_ptr.vmem [resolvable:$true] %s1623
          %1629 = dma.vmem_to_hbm [thread:$0]  %s1624, 8192, %s1622, %s1610, 128, 128, 8
        $region36: #{tpu_custom_call.1} parent=31 // pred_fallthru
          _
      $region32: #{tpu_custom_call.1} parent=5 // pred_fallthru
        _
      %p1630 = scmp.le.s32.totalorder 2, %s12
      // Predicated region
      $region37: #{tpu_custom_call.1} parent=5 // pred_check
        %p1631 = pneg %p1630
      $region38: #{tpu_custom_call.1} parent=5 // pred_check_branch
        %1633 = sbr.rel (%p1631) target = $region40
      $region39: #{tpu_custom_call.1} parent=5 // pred_region
        %s1634 = ssub.s32 %s12, 2
        // Predicated region
        $region41: #{tpu_custom_call.1} parent=39 // pred_check
          %p1635 = pneg %p104
        $region42: #{tpu_custom_call.1} parent=39 // pred_check_branch
          %1637 = sbr.rel (%p1635) target = $region44
        $region43: #{tpu_custom_call.1} parent=39 // pred_region
          %s1638 = sand.u32 %s89, 1
          %s1639 = scalar_lea.sflag [#allocation3], %s1638
          %s1640 = sand.u32 %s89, 1
          %s1641 = smul.addr %s1640, 512
          %s1642 = scalar_lea.vmem [#allocation2], %s1641
          %1643 = dma.done %s1639, 8192
        $region44: #{tpu_custom_call.1} parent=39 // pred_fallthru
          _
      $region40: #{tpu_custom_call.1} parent=5 // pred_fallthru
        _
    $region6: #{tpu_custom_call.1} parent=1 // loop_footer
      %s16 = sadd.s32 1, %s12
    $region7: #{tpu_custom_call.1} parent=1 // loop_footer_branch
      %11 = sbr.rel target = $region3
    $region8: #{tpu_custom_call.1} parent=1 // loop_exit
      _
    %1644 = vsyncpa [#allocation3], 1
    %s1645 = scalar_lea.sflag [#allocation3], 1
    %1646 = vsyncpa %s1645, 1

</llo_original>
